<compile_context>
chip_gen: v7x
topology: tpu7x:2x2x1
jax: 0.10.0
libtpu: 0.0.40
codegen_flags: <defaults>
</compile_context>

<pallas_src>
import functools

import jax
import jax.numpy as jnp
from jax.experimental import pallas as pl
from jax.experimental.pallas import tpu as pltpu

LANE = 128


def _round_up(n, m):
    return (n + m - 1) // m * m


# ----------------------------------------------------------------------------
# Kernel A: fused stem 3x3 conv + swish + head 1x1 conv + swish + pool-partial
# ----------------------------------------------------------------------------
def _fused_stem_head_pool_kernel(x_ref, ws_ref, bs_ref, wh_ref, bh_ref,
                                 part_ref, *, th, W):
    # x_ref : (1, H+2, W+2, Cin) bf16  (whole padded image, resident per batch)
    # ws_ref: (9, Cin, C1p) bf16       bs_ref: (1, C1p) f32
    # wh_ref: (C1p, Fp) bf16           bh_ref: (1, Fp) f32
    # part_ref: (1, 1, 1, Fp) f32      per-(batch, strip) pooled partial sum
    s = pl.program_id(1)
    cin = x_ref.shape[-1]
    c1p = ws_ref.shape[-1]
    row0 = pl.multiple_of(s * th, th)

    # One dynamic slice of the strip's rows (+2 halo) from the resident image.
    strip = x_ref[0, pl.ds(row0, th + 2), :, :]          # (th+2, W+2, cin)

    # --- stem 3x3 SAME conv: 9 shifted-window dots, accumulated in vregs ----
    acc = jnp.zeros((th * W, c1p), jnp.float32)
    for dy in range(3):
        rows = strip[dy:dy + th]                          # outer-axis slice
        for dx in range(3):
            # dx=1,2 slices are sublane-unaligned but only 3 lanes wide now.
            patch = rows[:, dx:dx + W, :].reshape(th * W, cin)
            acc = acc + jnp.dot(patch, ws_ref[dy * 3 + dx],
                                preferred_element_type=jnp.float32)
    h = acc + bs_ref[...]                                 # f32 epilogue
    h = h * jax.nn.sigmoid(h)                             # swish (f32, EUP)

    # --- head 1x1 conv + swish, fused (no HBM round trip) -------------------
    h2 = jnp.dot(h.astype(wh_ref.dtype), wh_ref[...],
                 preferred_element_type=jnp.float32) + bh_ref[...]
    h2 = h2 * jax.nn.sigmoid(h2)

    # --- partial global-average-pool for this strip --------------------------
    part = jnp.sum(h2, axis=0, keepdims=True)             # (1, Fp) f32
    part_ref[...] = part.reshape(part_ref.shape)


def fused_stem_head_pool(x_padded, w_stem, b_stem, w_head, b_head):
    """x_padded: [B, H+2, W+2, Cin] bf16 (SAME-padded, channels UNpadded).
       Returns per-strip pooled partial sums [B, S, 1, Fp] f32."""
    B, hp2, wp2, cin = x_padded.shape
    H, W = hp2 - 2, wp2 - 2
    c1p = w_stem.shape[-1]
    fp = w_head.shape[-1]

    # Strip height: largest divisor of H with th*W <= 128 rows (one MXU
    # M-tile per strip; also bounds the per-step VMEM at real resolutions).
    th = 1
    for cand in range(H, 0, -1):
        if H % cand == 0 and cand * W <= 128:
            th = cand
            break
    S = H // th

    kernel = functools.partial(_fused_stem_head_pool_kernel, th=th, W=W)
    cost = pl.CostEstimate(
        flops=2 * B * H * W * (9 * cin * c1p + c1p * fp),
        transcendentals=B * H * W * (c1p + fp),
        bytes_accessed=(x_padded.size * 2 + w_stem.size * 2 + b_stem.size * 4
                        + w_head.size * 2 + b_head.size * 4 + B * S * fp * 4))

    return pl.pallas_call(
        kernel,
        out_shape=jax.ShapeDtypeStruct((B, S, 1, fp), jnp.float32),
        grid_spec=pltpu.PrefetchScalarGridSpec(
            num_scalar_prefetch=0,
            grid=(B, S),
            in_specs=[
                # whole (small, unpadded-channel) image, resident across strips
                pl.BlockSpec((1, hp2, wp2, cin), lambda b, s: (b, 0, 0, 0)),
                pl.BlockSpec((9, cin, c1p), lambda b, s: (0, 0, 0)),   # resident
                pl.BlockSpec((1, c1p), lambda b, s: (0, 0)),           # resident
                pl.BlockSpec((c1p, fp), lambda b, s: (0, 0)),          # resident
                pl.BlockSpec((1, fp), lambda b, s: (0, 0)),            # resident
            ],
            out_specs=pl.BlockSpec((1, 1, 1, fp), lambda b, s: (b, s, 0, 0)),
        ),
        compiler_params=pltpu.CompilerParams(
            dimension_semantics=("parallel", "parallel"),
            vmem_limit_bytes=32 * 1024 * 1024),
        cost_estimate=cost,
    )(x_padded, w_stem, b_stem, w_head, b_head)


# ----------------------------------------------------------------------------
# Kernel B: strip-reduce + mean + batched `_fc` Linear
# ----------------------------------------------------------------------------
def _pool_fc_kernel(part_ref, wf_ref, bf_ref, o_ref, *, inv_hw):
    # part_ref: (B, S, 1, Fp) f32   wf_ref: (Fp, NCp) bf16   bf_ref: (1, NCp) f32
    part = part_ref[...]
    part = part.reshape(part.shape[0], -1, part.shape[-1])      # (B, S, Fp)
    pooled = jnp.sum(part, axis=1) * inv_hw                      # (B, Fp) f32
    o_ref[...] = (jnp.dot(pooled.astype(wf_ref.dtype), wf_ref[...],
                          preferred_element_type=jnp.float32) + bf_ref[...])


def pool_fc(partials, w_fc, b_fc, *, hw):
    """partials: [B, S, 1, Fp] f32 -> logits [B, NCp] f32 (batched fc)."""
    B, S, _, fp = partials.shape
    ncp = w_fc.shape[-1]
    kernel = functools.partial(_pool_fc_kernel, inv_hw=1.0 / hw)
    return pl.pallas_call(
        kernel,
        out_shape=jax.ShapeDtypeStruct((B, ncp), jnp.float32),
        grid_spec=pltpu.PrefetchScalarGridSpec(
            num_scalar_prefetch=0,
            grid=(1,),
            in_specs=[
                pl.BlockSpec((B, S, 1, fp), lambda i: (0, 0, 0, 0)),
                pl.BlockSpec((fp, ncp), lambda i: (0, 0)),
                pl.BlockSpec((1, ncp), lambda i: (0, 0)),
            ],
            out_specs=pl.BlockSpec((B, ncp), lambda i: (0, 0)),
        ),
        compiler_params=pltpu.CompilerParams(
            dimension_semantics=("arbitrary",)),
    )(partials, w_fc, b_fc)


# ----------------------------------------------------------------------------
# Parameters (logical + kernel-ready packed layout)
# ----------------------------------------------------------------------------
def init_params(key, num_classes, cin=3, c_stem=32, num_features=64):
    ks = jax.random.split(key, 6)
    return {
        "w_stem": 0.1 * jax.random.normal(ks[0], (3, 3, cin, c_stem), jnp.float32),
        "b_stem": 0.1 * jax.random.normal(ks[1], (c_stem,), jnp.float32),
        "w_head": 0.1 * jax.random.normal(ks[2], (c_stem, num_features), jnp.float32),
        "b_head": 0.1 * jax.random.normal(ks[3], (num_features,), jnp.float32),
        # The replaced backbone._fc = nn.Linear(num_features, num_classes)
        "w_fc": 0.1 * jax.random.normal(ks[4], (num_features, num_classes), jnp.float32),
        "b_fc": 0.1 * jax.random.normal(ks[5], (num_classes,), jnp.float32),
    }


def pack_params(p):
    """Pad OUTPUT channel dims to 128 (lane-dense), cast weights to bf16.
       The stem's input channels stay at Cin=3 (no 42x HBM pad)."""
    cin, c_stem = p["w_stem"].shape[2], p["w_stem"].shape[3]
    nf, nc = p["w_fc"].shape
    c1_p = _round_up(c_stem, LANE)
    f_p = _round_up(nf, LANE)
    nc_p = _round_up(nc, LANE)

    w_stem = jnp.zeros((3, 3, cin, c1_p), jnp.float32)
    w_stem = w_stem.at[..., :c_stem].set(p["w_stem"])
    return {
        "w_stem": w_stem.reshape(9, cin, c1_p).astype(jnp.bfloat16),
        "b_stem": jnp.zeros((1, c1_p), jnp.float32).at[0, :c_stem].set(p["b_stem"]),
        "w_head": jnp.zeros((c1_p, f_p), jnp.float32)
                    .at[:c_stem, :nf].set(p["w_head"]).astype(jnp.bfloat16),
        "b_head": jnp.zeros((1, f_p), jnp.float32).at[0, :nf].set(p["b_head"]),
        "w_fc": jnp.zeros((f_p, nc_p), jnp.float32)
                  .at[:nf, :nc].set(p["w_fc"]).astype(jnp.bfloat16),
        "b_fc": jnp.zeros((1, nc_p), jnp.float32).at[0, :nc].set(p["b_fc"]),
    }


# ----------------------------------------------------------------------------
# Forward
# ----------------------------------------------------------------------------
@functools.partial(jax.jit, static_argnames=("num_classes",))
def custom_model_forward(x_nhwc, packed, num_classes):
    # PyTorch: x.permute(0,3,1,2) -> NCHW.  Kernels here are NHWC, so the
    # permute is a pure layout choice (no data movement needed).
    B, H, W, _ = x_nhwc.shape
    # SAME spatial pad only — channels are NOT padded in HBM.
    xp = jnp.pad(x_nhwc, ((0, 0), (1, 1), (1, 1), (0, 0))).astype(jnp.bfloat16)
    partials = fused_stem_head_pool(xp, packed["w_stem"], packed["b_stem"],
                                    packed["w_head"], packed["b_head"])
    logits_p = pool_fc(partials, packed["w_fc"], packed["b_fc"], hw=H * W)
    return logits_p[:, :num_classes]


# ----------------------------------------------------------------------------
# Pure-JAX reference (mirrors the kernel's bf16 operand quantization)
# ----------------------------------------------------------------------------
def reference_forward(x, p):
    bf = lambda a: a.astype(jnp.bfloat16).astype(jnp.float32)
    B, H, W, _ = x.shape
    c1 = p["w_stem"].shape[-1]
    xp = bf(jnp.pad(x, ((0, 0), (1, 1), (1, 1), (0, 0))))
    w_stem = bf(p["w_stem"])
    acc = jnp.zeros((B, H, W, c1), jnp.float32)
    for dy in range(3):
        for dx in range(3):
            acc = acc + jnp.einsum("bhwc,co->bhwo",
                                   xp[:, dy:dy + H, dx:dx + W, :], w_stem[dy, dx])
    h = acc + p["b_stem"]
    h = bf(h * jax.nn.sigmoid(h))
    h2 = jnp.einsum("bhwc,cf->bhwf", h, bf(p["w_head"])) + p["b_head"]
    h2 = h2 * jax.nn.sigmoid(h2)
    pooled = jnp.mean(h2, axis=(1, 2))
    return bf(pooled) @ bf(p["w_fc"]) + p["b_fc"]


if __name__ == "__main__":
    B, H, W, Cin = 2, 16, 16, 3
    num_classes = 10

    key = jax.random.PRNGKey(0)
    kx, kp = jax.random.split(key)
    x = jax.random.normal(kx, (B, H, W, Cin), jnp.float32)
    params = init_params(kp, num_classes)
    packed = pack_params(params)

    out = custom_model_forward(x, packed, num_classes=num_classes)
    jax.block_until_ready(out)

    ref = reference_forward(x, params)
    assert out.shape == (B, num_classes), out.shape
    assert bool(jnp.all(jnp.isfinite(out)))
    assert bool(jnp.allclose(out, ref, atol=1e-2, rtol=1e-2)), (
        float(jnp.max(jnp.abs(out - ref))))
    print("KERNEL_OK")
</pallas_src>

<mosaic_0001>
module attributes {stable_mosaic.version = 11 : i64} {
  func.func @_fused_stem_head_pool_kernel(%arg0: i32, %arg1: i32, %arg2: memref<1x18x18x3xbf16, #tpu.memory_space<vmem>>, %arg3: memref<9x3x128xbf16, #tpu.memory_space<vmem>>, %arg4: memref<1x128xf32, #tpu.memory_space<vmem>>, %arg5: memref<128x128xbf16, #tpu.memory_space<vmem>>, %arg6: memref<1x128xf32, #tpu.memory_space<vmem>>, %arg7: memref<1x1x1x128xf32, #tpu.memory_space<vmem>>) attributes {dimension_semantics = [#tpu.dimension_semantics<parallel>, #tpu.dimension_semantics<parallel>], iteration_bounds = array<i64: 2, 2>, scalar_prefetch = 0 : i64, scratch_operands = 0 : i64, tpu.core_type = #tpu.core_type<tc>, window_params = [{transform_indices = @transform_0, window_bounds = array<i64: 1, 18, 18, 3>}, {pipeline_mode = #tpu.pipeline_mode<synchronous>, transform_indices = @transform_1, window_bounds = array<i64: 9, 3, 128>}, {pipeline_mode = #tpu.pipeline_mode<synchronous>, transform_indices = @transform_2, window_bounds = array<i64: 1, 128>}, {pipeline_mode = #tpu.pipeline_mode<synchronous>, transform_indices = @transform_3, window_bounds = array<i64: 128, 128>}, {pipeline_mode = #tpu.pipeline_mode<synchronous>, transform_indices = @transform_4, window_bounds = array<i64: 1, 128>}, {transform_indices = @transform_5, window_bounds = array<i64: 1, 1, 1, 128>}]} {
    %c8_i32 = arith.constant 8 : i32
    %0 = arith.muli %arg1, %c8_i32 : i32
    %1 = tpu.assume_multiple %0, 8 : i32
    %c0 = arith.constant 0 : index
    %2 = arith.index_cast %1 : i32 to index
    %c0_0 = arith.constant 0 : index
    %c0_1 = arith.constant 0 : index
    %3 = vector.load %arg2[%c0, %2, %c0_0, %c0_1] : memref<1x18x18x3xbf16, #tpu.memory_space<vmem>>, vector<1x10x18x3xbf16>
    %4 = vector.shape_cast %3 : vector<1x10x18x3xbf16> to vector<10x18x3xbf16>
    %cst = arith.constant 0.000000e+00 : f32
    %5 = vector.broadcast %cst : f32 to vector<128x128xf32>
    %6 = vector.extract_strided_slice %4 {offsets = [0, 0, 0], sizes = [8, 18, 3], strides = [1, 1, 1]} : vector<10x18x3xbf16> to vector<8x18x3xbf16>
    %7 = vector.extract_strided_slice %6 {offsets = [0, 0, 0], sizes = [8, 16, 3], strides = [1, 1, 1]} : vector<8x18x3xbf16> to vector<8x16x3xbf16>
    %8 = vector.shape_cast %7 : vector<8x16x3xbf16> to vector<128x3xbf16>
    %c0_2 = arith.constant 0 : index
    %c0_3 = arith.constant 0 : index
    %c0_4 = arith.constant 0 : index
    %9 = vector.load %arg3[%c0_2, %c0_3, %c0_4] : memref<9x3x128xbf16, #tpu.memory_space<vmem>>, vector<1x3x128xbf16>
    %10 = vector.shape_cast %9 : vector<1x3x128xbf16> to vector<3x128xbf16>
    %cst_5 = arith.constant dense<0.000000e+00> : vector<128x128xf32>
    %11 = tpu.matmul %8, %10, %cst_5 {dimension_numbers = #tpu.dot_dimension_numbers<[1], [0], [0], [1], [0, 0, 1, 1], [], []>} : vector<128x3xbf16>, vector<3x128xbf16>, vector<128x128xf32> -> vector<128x128xf32>
    %12 = arith.addf %5, %11 : vector<128x128xf32>
    %13 = vector.extract_strided_slice %6 {offsets = [0, 1, 0], sizes = [8, 16, 3], strides = [1, 1, 1]} : vector<8x18x3xbf16> to vector<8x16x3xbf16>
    %14 = vector.shape_cast %13 : vector<8x16x3xbf16> to vector<128x3xbf16>
    %c1 = arith.constant 1 : index
    %c0_6 = arith.constant 0 : index
    %c0_7 = arith.constant 0 : index
    %15 = vector.load %arg3[%c1, %c0_6, %c0_7] : memref<9x3x128xbf16, #tpu.memory_space<vmem>>, vector<1x3x128xbf16>
    %16 = vector.shape_cast %15 : vector<1x3x128xbf16> to vector<3x128xbf16>
    %cst_8 = arith.constant dense<0.000000e+00> : vector<128x128xf32>
    %17 = tpu.matmul %14, %16, %cst_8 {dimension_numbers = #tpu.dot_dimension_numbers<[1], [0], [0], [1], [0, 0, 1, 1], [], []>} : vector<128x3xbf16>, vector<3x128xbf16>, vector<128x128xf32> -> vector<128x128xf32>
    %18 = arith.addf %12, %17 : vector<128x128xf32>
    %19 = vector.extract_strided_slice %6 {offsets = [0, 2, 0], sizes = [8, 16, 3], strides = [1, 1, 1]} : vector<8x18x3xbf16> to vector<8x16x3xbf16>
    %20 = vector.shape_cast %19 : vector<8x16x3xbf16> to vector<128x3xbf16>
    %c2 = arith.constant 2 : index
    %c0_9 = arith.constant 0 : index
    %c0_10 = arith.constant 0 : index
    %21 = vector.load %arg3[%c2, %c0_9, %c0_10] : memref<9x3x128xbf16, #tpu.memory_space<vmem>>, vector<1x3x128xbf16>
    %22 = vector.shape_cast %21 : vector<1x3x128xbf16> to vector<3x128xbf16>
    %cst_11 = arith.constant dense<0.000000e+00> : vector<128x128xf32>
    %23 = tpu.matmul %20, %22, %cst_11 {dimension_numbers = #tpu.dot_dimension_numbers<[1], [0], [0], [1], [0, 0, 1, 1], [], []>} : vector<128x3xbf16>, vector<3x128xbf16>, vector<128x128xf32> -> vector<128x128xf32>
    %24 = arith.addf %18, %23 : vector<128x128xf32>
    %25 = vector.extract_strided_slice %4 {offsets = [1, 0, 0], sizes = [8, 18, 3], strides = [1, 1, 1]} : vector<10x18x3xbf16> to vector<8x18x3xbf16>
    %26 = vector.extract_strided_slice %25 {offsets = [0, 0, 0], sizes = [8, 16, 3], strides = [1, 1, 1]} : vector<8x18x3xbf16> to vector<8x16x3xbf16>
    %27 = vector.shape_cast %26 : vector<8x16x3xbf16> to vector<128x3xbf16>
    %c3 = arith.constant 3 : index
    %c0_12 = arith.constant 0 : index
    %c0_13 = arith.constant 0 : index
    %28 = vector.load %arg3[%c3, %c0_12, %c0_13] : memref<9x3x128xbf16, #tpu.memory_space<vmem>>, vector<1x3x128xbf16>
    %29 = vector.shape_cast %28 : vector<1x3x128xbf16> to vector<3x128xbf16>
    %cst_14 = arith.constant dense<0.000000e+00> : vector<128x128xf32>
    %30 = tpu.matmul %27, %29, %cst_14 {dimension_numbers = #tpu.dot_dimension_numbers<[1], [0], [0], [1], [0, 0, 1, 1], [], []>} : vector<128x3xbf16>, vector<3x128xbf16>, vector<128x128xf32> -> vector<128x128xf32>
    %31 = arith.addf %24, %30 : vector<128x128xf32>
    %32 = vector.extract_strided_slice %25 {offsets = [0, 1, 0], sizes = [8, 16, 3], strides = [1, 1, 1]} : vector<8x18x3xbf16> to vector<8x16x3xbf16>
    %33 = vector.shape_cast %32 : vector<8x16x3xbf16> to vector<128x3xbf16>
    %c4 = arith.constant 4 : index
    %c0_15 = arith.constant 0 : index
    %c0_16 = arith.constant 0 : index
    %34 = vector.load %arg3[%c4, %c0_15, %c0_16] : memref<9x3x128xbf16, #tpu.memory_space<vmem>>, vector<1x3x128xbf16>
    %35 = vector.shape_cast %34 : vector<1x3x128xbf16> to vector<3x128xbf16>
    %cst_17 = arith.constant dense<0.000000e+00> : vector<128x128xf32>
    %36 = tpu.matmul %33, %35, %cst_17 {dimension_numbers = #tpu.dot_dimension_numbers<[1], [0], [0], [1], [0, 0, 1, 1], [], []>} : vector<128x3xbf16>, vector<3x128xbf16>, vector<128x128xf32> -> vector<128x128xf32>
    %37 = arith.addf %31, %36 : vector<128x128xf32>
    %38 = vector.extract_strided_slice %25 {offsets = [0, 2, 0], sizes = [8, 16, 3], strides = [1, 1, 1]} : vector<8x18x3xbf16> to vector<8x16x3xbf16>
    %39 = vector.shape_cast %38 : vector<8x16x3xbf16> to vector<128x3xbf16>
    %c5 = arith.constant 5 : index
    %c0_18 = arith.constant 0 : index
    %c0_19 = arith.constant 0 : index
    %40 = vector.load %arg3[%c5, %c0_18, %c0_19] : memref<9x3x128xbf16, #tpu.memory_space<vmem>>, vector<1x3x128xbf16>
    %41 = vector.shape_cast %40 : vector<1x3x128xbf16> to vector<3x128xbf16>
    %cst_20 = arith.constant dense<0.000000e+00> : vector<128x128xf32>
    %42 = tpu.matmul %39, %41, %cst_20 {dimension_numbers = #tpu.dot_dimension_numbers<[1], [0], [0], [1], [0, 0, 1, 1], [], []>} : vector<128x3xbf16>, vector<3x128xbf16>, vector<128x128xf32> -> vector<128x128xf32>
    %43 = arith.addf %37, %42 : vector<128x128xf32>
    %44 = vector.extract_strided_slice %4 {offsets = [2, 0, 0], sizes = [8, 18, 3], strides = [1, 1, 1]} : vector<10x18x3xbf16> to vector<8x18x3xbf16>
    %45 = vector.extract_strided_slice %44 {offsets = [0, 0, 0], sizes = [8, 16, 3], strides = [1, 1, 1]} : vector<8x18x3xbf16> to vector<8x16x3xbf16>
    %46 = vector.shape_cast %45 : vector<8x16x3xbf16> to vector<128x3xbf16>
    %c6 = arith.constant 6 : index
    %c0_21 = arith.constant 0 : index
    %c0_22 = arith.constant 0 : index
    %47 = vector.load %arg3[%c6, %c0_21, %c0_22] : memref<9x3x128xbf16, #tpu.memory_space<vmem>>, vector<1x3x128xbf16>
    %48 = vector.shape_cast %47 : vector<1x3x128xbf16> to vector<3x128xbf16>
    %cst_23 = arith.constant dense<0.000000e+00> : vector<128x128xf32>
    %49 = tpu.matmul %46, %48, %cst_23 {dimension_numbers = #tpu.dot_dimension_numbers<[1], [0], [0], [1], [0, 0, 1, 1], [], []>} : vector<128x3xbf16>, vector<3x128xbf16>, vector<128x128xf32> -> vector<128x128xf32>
    %50 = arith.addf %43, %49 : vector<128x128xf32>
    %51 = vector.extract_strided_slice %44 {offsets = [0, 1, 0], sizes = [8, 16, 3], strides = [1, 1, 1]} : vector<8x18x3xbf16> to vector<8x16x3xbf16>
    %52 = vector.shape_cast %51 : vector<8x16x3xbf16> to vector<128x3xbf16>
    %c7 = arith.constant 7 : index
    %c0_24 = arith.constant 0 : index
    %c0_25 = arith.constant 0 : index
    %53 = vector.load %arg3[%c7, %c0_24, %c0_25] : memref<9x3x128xbf16, #tpu.memory_space<vmem>>, vector<1x3x128xbf16>
    %54 = vector.shape_cast %53 : vector<1x3x128xbf16> to vector<3x128xbf16>
    %cst_26 = arith.constant dense<0.000000e+00> : vector<128x128xf32>
    %55 = tpu.matmul %52, %54, %cst_26 {dimension_numbers = #tpu.dot_dimension_numbers<[1], [0], [0], [1], [0, 0, 1, 1], [], []>} : vector<128x3xbf16>, vector<3x128xbf16>, vector<128x128xf32> -> vector<128x128xf32>
    %56 = arith.addf %50, %55 : vector<128x128xf32>
    %57 = vector.extract_strided_slice %44 {offsets = [0, 2, 0], sizes = [8, 16, 3], strides = [1, 1, 1]} : vector<8x18x3xbf16> to vector<8x16x3xbf16>
    %58 = vector.shape_cast %57 : vector<8x16x3xbf16> to vector<128x3xbf16>
    %c8 = arith.constant 8 : index
    %c0_27 = arith.constant 0 : index
    %c0_28 = arith.constant 0 : index
    %59 = vector.load %arg3[%c8, %c0_27, %c0_28] : memref<9x3x128xbf16, #tpu.memory_space<vmem>>, vector<1x3x128xbf16>
    %60 = vector.shape_cast %59 : vector<1x3x128xbf16> to vector<3x128xbf16>
    %cst_29 = arith.constant dense<0.000000e+00> : vector<128x128xf32>
    %61 = tpu.matmul %58, %60, %cst_29 {dimension_numbers = #tpu.dot_dimension_numbers<[1], [0], [0], [1], [0, 0, 1, 1], [], []>} : vector<128x3xbf16>, vector<3x128xbf16>, vector<128x128xf32> -> vector<128x128xf32>
    %62 = arith.addf %56, %61 : vector<128x128xf32>
    %c0_30 = arith.constant 0 : index
    %c0_31 = arith.constant 0 : index
    %63 = vector.load %arg4[%c0_30, %c0_31] : memref<1x128xf32, #tpu.memory_space<vmem>>, vector<1x128xf32>
    %64 = vector.broadcast %63 : vector<1x128xf32> to vector<128x128xf32>
    %65 = arith.addf %62, %64 : vector<128x128xf32>
    %66 = arith.negf %65 : vector<128x128xf32>
    %67 = math.exp %66 : vector<128x128xf32>
    %cst_32 = arith.constant 1.000000e+00 : f32
    %68 = vector.broadcast %cst_32 : f32 to vector<128x128xf32>
    %69 = arith.addf %68, %67 : vector<128x128xf32>
    %70 = arith.divf %68, %69 : vector<128x128xf32>
    %71 = arith.mulf %65, %70 : vector<128x128xf32>
    %72 = arith.truncf %71 : vector<128x128xf32> to vector<128x128xbf16>
    %c0_33 = arith.constant 0 : index
    %c0_34 = arith.constant 0 : index
    %73 = vector.load %arg5[%c0_33, %c0_34] : memref<128x128xbf16, #tpu.memory_space<vmem>>, vector<128x128xbf16>
    %cst_35 = arith.constant dense<0.000000e+00> : vector<128x128xf32>
    %74 = tpu.matmul %72, %73, %cst_35 {dimension_numbers = #tpu.dot_dimension_numbers<[1], [0], [0], [1], [0, 0, 1, 1], [], []>} : vector<128x128xbf16>, vector<128x128xbf16>, vector<128x128xf32> -> vector<128x128xf32>
    %c0_36 = arith.constant 0 : index
    %c0_37 = arith.constant 0 : index
    %75 = vector.load %arg6[%c0_36, %c0_37] : memref<1x128xf32, #tpu.memory_space<vmem>>, vector<1x128xf32>
    %76 = vector.broadcast %75 : vector<1x128xf32> to vector<128x128xf32>
    %77 = arith.addf %74, %76 : vector<128x128xf32>
    %78 = arith.negf %77 : vector<128x128xf32>
    %79 = math.exp %78 : vector<128x128xf32>
    %cst_38 = arith.constant 1.000000e+00 : f32
    %80 = vector.broadcast %cst_38 : f32 to vector<128x128xf32>
    %81 = arith.addf %80, %79 : vector<128x128xf32>
    %82 = arith.divf %80, %81 : vector<128x128xf32>
    %83 = arith.mulf %77, %82 : vector<128x128xf32>
    %cst_39 = arith.constant dense<0.000000e+00> : vector<128xf32>
    %84 = vector.multi_reduction <add>, %83, %cst_39 [0] : vector<128x128xf32> to vector<128xf32>
    %85 = vector.shape_cast %84 : vector<128xf32> to vector<1x128xf32>
    %86 = vector.shape_cast %85 : vector<1x128xf32> to vector<1x1x1x128xf32>
    %c0_40 = arith.constant 0 : index
    %c0_41 = arith.constant 0 : index
    %c0_42 = arith.constant 0 : index
    %c0_43 = arith.constant 0 : index
    %87 = vector.load %arg7[%c0_40, %c0_41, %c0_42, %c0_43] : memref<1x1x1x128xf32, #tpu.memory_space<vmem>>, vector<1x1x1x128xf32>
    tpu.vector_store %arg7[%c0_40, %c0_41, %c0_42, %c0_43], %86 {strides = array<i32>} : memref<1x1x1x128xf32, #tpu.memory_space<vmem>>, vector<1x1x1x128xf32>,
    return
  }
  func.func @transform_0(%arg0: i32, %arg1: i32) -> (i32, i32, i32, i32) {
    %c0_i32 = arith.constant 0 : i32
    %c0_i32_0 = arith.constant 0 : i32
    %c0_i32_1 = arith.constant 0 : i32
    %c0_i32_2 = arith.constant 0 : i32
    return %arg0, %c0_i32, %c0_i32_0, %c0_i32_1 : i32, i32, i32, i32
  }
  func.func @transform_1(%arg0: i32, %arg1: i32) -> (i32, i32, i32) {
    %c0_i32 = arith.constant 0 : i32
    %c0_i32_0 = arith.constant 0 : i32
    %c0_i32_1 = arith.constant 0 : i32
    %c0_i32_2 = arith.constant 0 : i32
    return %c0_i32, %c0_i32_0, %c0_i32_1 : i32, i32, i32
  }
  func.func @transform_2(%arg0: i32, %arg1: i32) -> (i32, i32) {
    %c0_i32 = arith.constant 0 : i32
    %c0_i32_0 = arith.constant 0 : i32
    %c0_i32_1 = arith.constant 0 : i32
    return %c0_i32, %c0_i32_0 : i32, i32
  }
  func.func @transform_3(%arg0: i32, %arg1: i32) -> (i32, i32) {
    %c0_i32 = arith.constant 0 : i32
    %c0_i32_0 = arith.constant 0 : i32
    %c0_i32_1 = arith.constant 0 : i32
    return %c0_i32, %c0_i32_0 : i32, i32
  }
  func.func @transform_4(%arg0: i32, %arg1: i32) -> (i32, i32) {
    %c0_i32 = arith.constant 0 : i32
    %c0_i32_0 = arith.constant 0 : i32
    %c0_i32_1 = arith.constant 0 : i32
    return %c0_i32, %c0_i32_0 : i32, i32
  }
  func.func @transform_5(%arg0: i32, %arg1: i32) -> (i32, i32, i32, i32) {
    %c0_i32 = arith.constant 0 : i32
    %c0_i32_0 = arith.constant 0 : i32
    %c0_i32_1 = arith.constant 0 : i32
    return %arg0, %arg1, %c0_i32, %c0_i32_0 : i32, i32, i32, i32
  }
}

module attributes {stable_mosaic.version = 11 : i64} {
  func.func @_pool_fc_kernel(%arg0: i32, %arg1: memref<2x2x1x128xf32, #tpu.memory_space<vmem>>, %arg2: memref<128x128xbf16, #tpu.memory_space<vmem>>, %arg3: memref<1x128xf32, #tpu.memory_space<vmem>>, %arg4: memref<2x128xf32, #tpu.memory_space<vmem>>) attributes {dimension_semantics = [#tpu.dimension_semantics<arbitrary>], iteration_bounds = array<i64: 1>, scalar_prefetch = 0 : i64, scratch_operands = 0 : i64, tpu.core_type = #tpu.core_type<tc>, window_params = [{pipeline_mode = #tpu.pipeline_mode<synchronous>, transform_indices = @transform_0, window_bounds = array<i64: 2, 2, 1, 128>}, {pipeline_mode = #tpu.pipeline_mode<synchronous>, transform_indices = @transform_1, window_bounds = array<i64: 128, 128>}, {pipeline_mode = #tpu.pipeline_mode<synchronous>, transform_indices = @transform_2, window_bounds = array<i64: 1, 128>}, {pipeline_mode = #tpu.pipeline_mode<synchronous>, transform_indices = @transform_3, window_bounds = array<i64: 2, 128>}]} {
    %c0 = arith.constant 0 : index
    %c0_0 = arith.constant 0 : index
    %c0_1 = arith.constant 0 : index
    %c0_2 = arith.constant 0 : index
    %0 = vector.load %arg1[%c0, %c0_0, %c0_1, %c0_2] : memref<2x2x1x128xf32, #tpu.memory_space<vmem>>, vector<2x2x1x128xf32>
    %1 = vector.shape_cast %0 : vector<2x2x1x128xf32> to vector<2x2x128xf32>
    %cst = arith.constant dense<0.000000e+00> : vector<2x128xf32>
    %2 = vector.multi_reduction <add>, %1, %cst [1] : vector<2x2x128xf32> to vector<2x128xf32>
    %cst_3 = arith.constant 3.906250e-03 : f32
    %3 = vector.broadcast %cst_3 : f32 to vector<2x128xf32>
    %4 = arith.mulf %2, %3 : vector<2x128xf32>
    %5 = arith.truncf %4 : vector<2x128xf32> to vector<2x128xbf16>
    %c0_4 = arith.constant 0 : index
    %c0_5 = arith.constant 0 : index
    %6 = vector.load %arg2[%c0_4, %c0_5] : memref<128x128xbf16, #tpu.memory_space<vmem>>, vector<128x128xbf16>
    %cst_6 = arith.constant dense<0.000000e+00> : vector<2x128xf32>
    %7 = tpu.matmul %5, %6, %cst_6 {dimension_numbers = #tpu.dot_dimension_numbers<[1], [0], [0], [1], [0, 0, 1, 1], [], []>} : vector<2x128xbf16>, vector<128x128xbf16>, vector<2x128xf32> -> vector<2x128xf32>
    %c0_7 = arith.constant 0 : index
    %c0_8 = arith.constant 0 : index
    %8 = vector.load %arg3[%c0_7, %c0_8] : memref<1x128xf32, #tpu.memory_space<vmem>>, vector<1x128xf32>
    %9 = vector.broadcast %8 : vector<1x128xf32> to vector<2x128xf32>
    %10 = arith.addf %7, %9 : vector<2x128xf32>
    %c0_9 = arith.constant 0 : index
    %c0_10 = arith.constant 0 : index
    %11 = vector.load %arg4[%c0_9, %c0_10] : memref<2x128xf32, #tpu.memory_space<vmem>>, vector<2x128xf32>
    tpu.vector_store %arg4[%c0_9, %c0_10], %10 {strides = array<i32>} : memref<2x128xf32, #tpu.memory_space<vmem>>, vector<2x128xf32>,
    return
  }
  func.func @transform_0(%arg0: i32) -> (i32, i32, i32, i32) {
    %c0_i32 = arith.constant 0 : i32
    %c0_i32_0 = arith.constant 0 : i32
    %c0_i32_1 = arith.constant 0 : i32
    %c0_i32_2 = arith.constant 0 : i32
    %c0_i32_3 = arith.constant 0 : i32
    return %c0_i32, %c0_i32_0, %c0_i32_1, %c0_i32_2 : i32, i32, i32, i32
  }
  func.func @transform_1(%arg0: i32) -> (i32, i32) {
    %c0_i32 = arith.constant 0 : i32
    %c0_i32_0 = arith.constant 0 : i32
    %c0_i32_1 = arith.constant 0 : i32
    return %c0_i32, %c0_i32_0 : i32, i32
  }
  func.func @transform_2(%arg0: i32) -> (i32, i32) {
    %c0_i32 = arith.constant 0 : i32
    %c0_i32_0 = arith.constant 0 : i32
    %c0_i32_1 = arith.constant 0 : i32
    return %c0_i32, %c0_i32_0 : i32, i32
  }
  func.func @transform_3(%arg0: i32) -> (i32, i32) {
    %c0_i32 = arith.constant 0 : i32
    %c0_i32_0 = arith.constant 0 : i32
    %c0_i32_1 = arith.constant 0 : i32
    return %c0_i32, %c0_i32_0 : i32, i32
  }
}

</mosaic_0001>

<llo_original>
// kernel: custom_model_forward.3
$region0: #{custom_model_forward.3}
  #allocation0 [shape = 'u32[]', space=smem, size = 0x4, offset = 0x4, fixed_abs, tag = 'smem constant byte address 0x4 - core index']
  #allocation1 [shape = 'u32[144,128]{1,0:T(1,128)}', space=vmem, size = 0x12000, scoped, tag = 'internal scratch']
  %s0 = inlined_call_operand.vmem [shape: f32[2,2,1,128], index: 0, kind: input, shape index: {}]
  %s1 = inlined_call_operand.vmem [shape: bf16[128,128], index: 1, kind: input, shape index: {}]
  %s2 = inlined_call_operand.vmem [shape: f32[1,128], index: 2, kind: input, shape index: {}]
  %s3 = inlined_call_operand.hbm [shape: f32[2,128], index: 3, kind: output, shape index: {}]
  %s4 = sld [smem:[#allocation0]]
  $region22: #{custom_model_forward.3} parent=0
    _
  %s6 = ssub.s32 1, %s4
  %s7 = scalar_select 0, %s6, %s4
  $region1: #{custom_model_forward.3} parent=0
    #allocation2 [shape = 'u8[1024]{0}', space=vmem, size = 0x400, scoped, tag = 'output window, operand 0, single buffered']
    #allocation3 [shape = 's32[1]{0}', space=sflag, size = 0x4, scoped, tag = 'scoped memory for custom_model_forward.3']
    %8 = vsyncpa [#allocation3], 0
    // Predicated region
    $region2: #{custom_model_forward.3} parent=1 // pred_check
      _
    $region3: #{custom_model_forward.3} parent=1 // pred_check_branch
      %10 = sbr.rel (0) target = $region5
    $region4: #{custom_model_forward.3} parent=1 // pred_region
      _
    $region5: #{custom_model_forward.3} parent=1 // pred_fallthru
      _
    // Predicated region
    $region6: #{custom_model_forward.3} parent=1 // pred_check
      _
    $region7: #{custom_model_forward.3} parent=1 // pred_check_branch
      %12 = sbr.rel (0) target = $region9
    $region8: #{custom_model_forward.3} parent=1 // pred_region
      _
    $region9: #{custom_model_forward.3} parent=1 // pred_fallthru
      _
    // Predicated region
    $region10: #{custom_model_forward.3} parent=1 // pred_check
      _
    $region11: #{custom_model_forward.3} parent=1 // pred_check_branch
      %14 = sbr.rel (0) target = $region13
    $region12: #{custom_model_forward.3} parent=1 // pred_region
      _
    $region13: #{custom_model_forward.3} parent=1 // pred_fallthru
      _
    %v16 = vld [vmem:[%s0] sm:$0x1]
    %v17 = vld [vmem:[%s0 + $0x1] sm:$0x1]
    %v18 = vld [vmem:[%s0 + $0x2] sm:$0x1]
    %v19 = vld [vmem:[%s0 + $0x3] sm:$0x1]
    %v24 = vcombine.low %v16, %v17
    %v26 = vunpack.c.l.s4 1966171168
    %v27 = vunpack.c.0.s8 %v26
    %v28 = vlaneseq
    %v29 = vshrl.u32 %v28, 7
    %v30 = vsub.s32 %v27, %v29
    %v31 = vrot.slane %v24, %v30
    %v33 = vunpack.c.l.s4 1966171168
    %v34 = vunpack.c.0.s8 %v33
    %v35 = vlaneseq
    %v36 = vshrl.u32 %v35, 7
    %v37 = vsub.s32 %v34, %v36
    %v38 = vrot.slane %v31, %v37
    %v39 = vcombine.low %v18, %v19
    %v41 = vunpack.c.l.s4 1966171168
    %v42 = vunpack.c.0.s8 %v41
    %v43 = vlaneseq
    %v44 = vshrl.u32 %v43, 7
    %v45 = vsub.s32 %v42, %v44
    %v46 = vrot.slane %v39, %v45
    %v48 = vunpack.c.l.s4 1966171168
    %v49 = vunpack.c.0.s8 %v48
    %v50 = vlaneseq
    %v51 = vshrl.u32 %v50, 7
    %v52 = vsub.s32 %v49, %v51
    %v53 = vrot.slane %v46, %v52
    %vm56 = vcmask 1041408
    %v57 = vsel %vm56, %v38, 0.0
    %v58 = vrot.slane %v57, 4
    %v59 = vadd.f32 %v57, %v58
    %v60 = vrot.slane %v59, 2
    %v61 = vadd.f32 %v59, %v60
    %v62 = vrot.slane %v61, 1
    %v63 = vadd.f32 %v61, %v62
    %v64 = vsel %vm56, %v53, 0.0
    %v65 = vrot.slane %v64, 4
    %v66 = vadd.f32 %v64, %v65
    %v67 = vrot.slane %v66, 2
    %v68 = vadd.f32 %v66, %v67
    %v69 = vrot.slane %v68, 1
    %v70 = vadd.f32 %v68, %v69
    %v71 = vmul.f32 %v63, 0.00390625
    %v72 = vmul.f32 %v70, 0.00390625
    %v73 = vpack.c.bf16 %v71, %v71
    %v74 = vpack.c.bf16 %v72, %v72
    %v75 = vld [vmem:[%s1] sm:$0xf]
    %v76 = vld [vmem:[%s1 + $0x4] sm:$0xf]
    %v77 = vld [vmem:[%s1 + $0x8] sm:$0xf]
    %v78 = vld [vmem:[%s1 + $0xc] sm:$0xf]
    %v79 = vld [vmem:[%s1 + $0x10] sm:$0xf]
    %v80 = vld [vmem:[%s1 + $0x14] sm:$0xf]
    %v81 = vld [vmem:[%s1 + $0x18] sm:$0xf]
    %v82 = vld [vmem:[%s1 + $0x1c] sm:$0xf]
    %v83 = vld [vmem:[%s1 + $0x20] sm:$0xf]
    %v84 = vld [vmem:[%s1 + $0x24] sm:$0xf]
    %v85 = vld [vmem:[%s1 + $0x28] sm:$0xf]
    %v86 = vld [vmem:[%s1 + $0x2c] sm:$0xf]
    %v87 = vld [vmem:[%s1 + $0x30] sm:$0xf]
    %v88 = vld [vmem:[%s1 + $0x34] sm:$0xf]
    %v89 = vld [vmem:[%s1 + $0x38] sm:$0xf]
    %v90 = vld [vmem:[%s1 + $0x3c] sm:$0xf]
    %v91 = vld [vmem:[%s2] sm:$0x1]
    %v93 = vlaneseq
    %v94 = vshrl.u32 %v93, 7
    %v95 = vsub.s32 0, %v94
    %v96 = vrot.slane %v91, %v95
    %v100 = vunpack.c.l.b16 %v73
    %v101 = vunpack.c.l.b16 %v74
    %v102 = vrot.slane %v101, 7
    %vm103 = vcmask 1041409
    %v104 = vsel %vm103, %v102, %v100
    %v105 = vpack.c.b16 %v104, %v104
    %v123 = vunpack.c.l.b16 %v75
    %v124 = vunpack.c.l.b16 %v76
    %v125 = vunpack.c.l.b16 %v77
    %v126 = vunpack.c.l.b16 %v78
    %v127 = vunpack.c.l.b16 %v79
    %v128 = vunpack.c.l.b16 %v80
    %v129 = vunpack.c.l.b16 %v81
    %v130 = vunpack.c.l.b16 %v82
    %v131 = vunpack.c.l.b16 %v83
    %v132 = vunpack.c.l.b16 %v84
    %v133 = vunpack.c.l.b16 %v85
    %v134 = vunpack.c.l.b16 %v86
    %v135 = vunpack.c.l.b16 %v87
    %v136 = vunpack.c.l.b16 %v88
    %v137 = vunpack.c.l.b16 %v89
    %v138 = vunpack.c.l.b16 %v90
    %v139 = vpack.c.b16 %v124, %v123
    %v140 = vpack.c.b16 %v126, %v125
    %v141 = vpack.c.b16 %v128, %v127
    %v142 = vpack.c.b16 %v130, %v129
    %v143 = vpack.c.b16 %v132, %v131
    %v144 = vpack.c.b16 %v134, %v133
    %v145 = vpack.c.b16 %v136, %v135
    %v146 = vpack.c.b16 %v138, %v137
    %155 = vmatprep.subr.bf16.mxu0 0
    %156 = vmatpush1.bf16.msra.mxu0 %v139
    %157 = vmatprep.subr.bf16.mxu0 0
    %158 = vmatpush1.bf16.msra.mxu0 %v140
    %159 = vmatprep.subr.bf16.mxu0 0
    %160 = vmatpush1.bf16.msra.mxu0 %v141
    %161 = vmatprep.subr.bf16.mxu0 0
    %162 = vmatpush1.bf16.msra.mxu0 %v142
    %163 = vmatprep.subr.bf16.mxu0 0
    %164 = vmatpush1.bf16.msra.mxu0 %v143
    %165 = vmatprep.subr.bf16.mxu0 0
    %166 = vmatpush1.bf16.msra.mxu0 %v144
    %167 = vmatprep.subr.bf16.mxu0 0
    %168 = vmatpush1.bf16.msra.mxu0 %v145
    %169 = vmatprep.subr.bf16.mxu0 0
    %170 = vmatpush1.bf16.msra.mxu0 %v146
    %171 = vmatprep.subr.bf16.mxu0 0
    %172 = vmatpush1.bf16.msra.mxu0 0
    %173 = vmatprep.subr.bf16.mxu0 0
    %174 = vmatpush1.bf16.msra.mxu0 0
    %175 = vmatprep.subr.bf16.mxu0 0
    %176 = vmatpush1.bf16.msra.mxu0 0
    %177 = vmatprep.subr.bf16.mxu0 0
    %178 = vmatpush1.bf16.msra.mxu0 0
    %179 = vmatprep.subr.bf16.mxu0 0
    %180 = vmatpush1.bf16.msra.mxu0 0
    %181 = vmatprep.subr.bf16.mxu0 0
    %182 = vmatpush1.bf16.msra.mxu0 0
    %183 = vmatprep.subr.bf16.mxu0 0
    %184 = vmatpush1.bf16.msra.mxu0 0
    %185 = vmatprep.subr.bf16.mxu0 0
    %186 = vmatpush1.bf16.msra.mxu0 0
    %187 = vmatprep.mubr.bf16.mxu0 0
    %188 = vmatmul.mubr.bf16.gmra.mrb[0].mxu0 %v105
    %v189 = vpop.f32.mrb[0].mxu0
    %v190 = vadd.f32 %v96, %v189
    %v191 = vpop.f32.mrb[0].mxu0
    %v192 = vpop.f32.mrb[0].mxu0
    %v193 = vpop.f32.mrb[0].mxu0
    %194 = vdwg.mxu0
    %195 = vst [vmem:[#allocation2] sm:$0x3] %v190
    // Predicated region
    $region14: #{custom_model_forward.3} parent=1 // pred_check
      _
    $region15: #{custom_model_forward.3} parent=1 // pred_check_branch
      %197 = sbr.rel (0) target = $region17
    $region16: #{custom_model_forward.3} parent=1 // pred_region
      %s199 = ssub.s32 32, 32
      %200 = vsyncadd [#allocation3], %s199
      %s202 = sshll.u32 [#allocation2], 4
      %s203 = int_to_ptr.vmem [resolvable:$true] %s202
      %205 = dma.vmem_to_hbm [thread:$0]  %s203, 32, %s3, [#allocation3]
    $region17: #{custom_model_forward.3} parent=1 // pred_fallthru
      _
    // Predicated region
    $region18: #{custom_model_forward.3} parent=1 // pred_check
      _
    $region19: #{custom_model_forward.3} parent=1 // pred_check_branch
      %207 = sbr.rel (0) target = $region21
    $region20: #{custom_model_forward.3} parent=1 // pred_region
      %208 = dma.done [#allocation3], 32
    $region21: #{custom_model_forward.3} parent=1 // pred_fallthru
      _
    %209 = vsyncpa [#allocation3], 1

// kernel: custom_model_forward.2
$region0: #{custom_model_forward.2}
  #allocation0 [shape = 'u32[]', space=smem, size = 0x4, offset = 0x4, fixed_abs, tag = 'smem constant byte address 0x4 - core index']
  #allocation1 [shape = 'u32[144,128]{1,0:T(1,128)}', space=vmem, size = 0x12000, scoped, tag = 'internal scratch']
  %s0 = inlined_call_operand.vmem [shape: bf16[2,18,18,3], index: 0, kind: input, shape index: {}]
  %s1 = inlined_call_operand.vmem [shape: bf16[9,3,128], index: 1, kind: input, shape index: {}]
  %s2 = inlined_call_operand.vmem [shape: f32[1,128], index: 2, kind: input, shape index: {}]
  %s3 = inlined_call_operand.vmem [shape: bf16[128,128], index: 3, kind: input, shape index: {}]
  %s4 = inlined_call_operand.vmem [shape: f32[1,128], index: 4, kind: input, shape index: {}]
  %s5 = inlined_call_operand.vmem [shape: f32[2,2,1,128], index: 5, kind: output, shape index: {}]
  %s6 = sld [smem:[#allocation0]]
  $region53: #{custom_model_forward.2} parent=0
    _
  %s8 = ssub.s32 1, %s6
  %s9 = scalar_select 0, %s8, %s6
  loop: start=0, step=1, limit=6
  $region2: #{custom_model_forward.2} parent=0 // loop_pre_header
    _
  $region3: #{custom_model_forward.2} parent=0 // loop_header
    %s11 = sphi 0, %s15
    %p12 = scmp.ge.s32.totalorder %s11, 6
    %s18 = sphi 0, %s30
    %s19 = sphi 0, %s26
    %s20 = sphi 0, %s18
    %s21 = sphi 0, %s19
    %s22 = sphi 0, %s20
    %s23 = sphi 0, %s21
    %s33 = sphi 0, %s35
    %s36 = sphi 0, %s33
    %s37 = sphi 0, %s36
    %s53 = sphi 0, %s37
    %s57 = sphi 0, %s57
    %s59 = sphi 0, %s57
    %s60 = sphi 0, %s59
    %s74 = sphi 0, %s60
    %s78 = sphi 0, %s78
    %s80 = sphi 0, %s78
    %s81 = sphi 0, %s80
    %s95 = sphi 0, %s81
    %s99 = sphi 0, %s99
    %s101 = sphi 0, %s99
    %s102 = sphi 0, %s101
    %s116 = sphi 0, %s102
    %s120 = sphi 0, %s120
    %s122 = sphi 0, %s120
    %s123 = sphi 0, %s122
    %s137 = sphi 0, %s123
    %s145 = sphi 0, %s147
    %s148 = sphi 0, %s145
    %s149 = sphi 0, %s148
    %s165 = sphi 0, %s149
  $region4: #{custom_model_forward.2} parent=0 // loop_header_branch
    %14 = sbr.rel (%p12) target = $region8
  $region5: #{custom_model_forward.2} parent=0 // loop_body
    %s16 = ssub.s32 %s11, 1
    %s17 = ssub.s32 %s11, 2
    %s24 = sadd.s32 1, %s19
    %p25 = scmp.ge.s32.totalorder %s24, 2
    %s26 = scalar_select %p25, 0, %s24
    %s27 = sadd.s32 1, %s18
    %s28 = scalar_select %p25, %s27, %s18
    %p29 = scmp.ge.s32.totalorder %s28, 2
    %s30 = scalar_select %p29, 0, %s28
    %s31 = ssub.s32 %s18, %s30
    %p32 = scmp.eq.s32.totalorder %s31, 0
    %s34 = sadd.s32 %s33, 1
    %s35 = scalar_select %p32, %s33, %s34
    %p38 = pneg %p32
    %p39 = scmp.eq.s32.totalorder %s11, 3
    %p40 = por %p38, %p39
    %p41 = scmp.ne.s32.totalorder %s33, %s36
    %p42 = scmp.eq.s32.totalorder %s11, 0
    %p43 = por %p41, %p42
    %p44 = scmp.ne.s32.totalorder %s33, %s36
    %p45 = scmp.eq.s32.totalorder %s16, 3
    %p46 = por %p44, %p45
    %p47 = scmp.ne.s32.totalorder %s36, %s37
    %p48 = scmp.eq.s32.totalorder %s16, 0
    %p49 = por %p47, %p48
    %p50 = scmp.ne.s32.totalorder %s36, %s37
    %p51 = scmp.eq.s32.totalorder %s17, 3
    %p52 = por %p50, %p51
    %p54 = scmp.ne.s32.totalorder %s37, %s53
    %p55 = scmp.eq.s32.totalorder %s17, 0
    %p56 = por %p54, %p55
    %s58 = sadd.s32 %s57, 1
    %p61 = scmp.eq.s32.totalorder %s11, 3
    %p62 = scmp.ne.s32.totalorder %s57, %s59
    %p63 = scmp.eq.s32.totalorder %s11, 0
    %p64 = por %p62, %p63
    %p65 = scmp.ne.s32.totalorder %s57, %s59
    %p66 = scmp.eq.s32.totalorder %s16, 3
    %p67 = por %p65, %p66
    %p68 = scmp.ne.s32.totalorder %s59, %s60
    %p69 = scmp.eq.s32.totalorder %s16, 0
    %p70 = por %p68, %p69
    %p71 = scmp.ne.s32.totalorder %s59, %s60
    %p72 = scmp.eq.s32.totalorder %s17, 3
    %p73 = por %p71, %p72
    %p75 = scmp.ne.s32.totalorder %s60, %s74
    %p76 = scmp.eq.s32.totalorder %s17, 0
    %p77 = por %p75, %p76
    %s79 = sadd.s32 %s78, 1
    %p82 = scmp.eq.s32.totalorder %s11, 3
    %p83 = scmp.ne.s32.totalorder %s78, %s80
    %p84 = scmp.eq.s32.totalorder %s11, 0
    %p85 = por %p83, %p84
    %p86 = scmp.ne.s32.totalorder %s78, %s80
    %p87 = scmp.eq.s32.totalorder %s16, 3
    %p88 = por %p86, %p87
    %p89 = scmp.ne.s32.totalorder %s80, %s81
    %p90 = scmp.eq.s32.totalorder %s16, 0
    %p91 = por %p89, %p90
    %p92 = scmp.ne.s32.totalorder %s80, %s81
    %p93 = scmp.eq.s32.totalorder %s17, 3
    %p94 = por %p92, %p93
    %p96 = scmp.ne.s32.totalorder %s81, %s95
    %p97 = scmp.eq.s32.totalorder %s17, 0
    %p98 = por %p96, %p97
    %s100 = sadd.s32 %s99, 1
    %p103 = scmp.eq.s32.totalorder %s11, 3
    %p104 = scmp.ne.s32.totalorder %s99, %s101
    %p105 = scmp.eq.s32.totalorder %s11, 0
    %p106 = por %p104, %p105
    %p107 = scmp.ne.s32.totalorder %s99, %s101
    %p108 = scmp.eq.s32.totalorder %s16, 3
    %p109 = por %p107, %p108
    %p110 = scmp.ne.s32.totalorder %s101, %s102
    %p111 = scmp.eq.s32.totalorder %s16, 0
    %p112 = por %p110, %p111
    %p113 = scmp.ne.s32.totalorder %s101, %s102
    %p114 = scmp.eq.s32.totalorder %s17, 3
    %p115 = por %p113, %p114
    %p117 = scmp.ne.s32.totalorder %s102, %s116
    %p118 = scmp.eq.s32.totalorder %s17, 0
    %p119 = por %p117, %p118
    %s121 = sadd.s32 %s120, 1
    %p124 = scmp.eq.s32.totalorder %s11, 3
    %p125 = scmp.ne.s32.totalorder %s120, %s122
    %p126 = scmp.eq.s32.totalorder %s11, 0
    %p127 = por %p125, %p126
    %p128 = scmp.ne.s32.totalorder %s120, %s122
    %p129 = scmp.eq.s32.totalorder %s16, 3
    %p130 = por %p128, %p129
    %p131 = scmp.ne.s32.totalorder %s122, %s123
    %p132 = scmp.eq.s32.totalorder %s16, 0
    %p133 = por %p131, %p132
    %p134 = scmp.ne.s32.totalorder %s122, %s123
    %p135 = scmp.eq.s32.totalorder %s17, 3
    %p136 = por %p134, %p135
    %p138 = scmp.ne.s32.totalorder %s123, %s137
    %p139 = scmp.eq.s32.totalorder %s17, 0
    %p140 = por %p138, %p139
    %s141 = ssub.s32 %s18, %s30
    %s142 = ssub.s32 %s19, %s26
    %s143 = sor.u32 %s141, %s142
    %p144 = scmp.eq.s32.totalorder %s143, 0
    %s146 = sadd.s32 %s145, 1
    %s147 = scalar_select %p144, %s145, %s146
    %p150 = pneg %p144
    %p151 = scmp.eq.s32.totalorder %s11, 3
    %p152 = por %p150, %p151
    %p153 = scmp.ne.s32.totalorder %s145, %s148
    %p154 = scmp.eq.s32.totalorder %s11, 0
    %p155 = por %p153, %p154
    %p156 = scmp.ne.s32.totalorder %s145, %s148
    %p157 = scmp.eq.s32.totalorder %s16, 3
    %p158 = por %p156, %p157
    %p159 = scmp.ne.s32.totalorder %s148, %s149
    %p160 = scmp.eq.s32.totalorder %s16, 0
    %p161 = por %p159, %p160
    %p162 = scmp.ne.s32.totalorder %s148, %s149
    %p163 = scmp.eq.s32.totalorder %s17, 3
    %p164 = por %p162, %p163
    %p166 = scmp.ne.s32.totalorder %s149, %s165
    %p167 = scmp.eq.s32.totalorder %s17, 0
    %p168 = por %p166, %p167
    %p169 = scmp.le.s32.totalorder 1, %s11
    %p170 = scmp.lt.s32.totalorder %s11, 5
    %p171 = pnand %p169, %p170
    %p172 = pneg %p171
    // Predicated region
    $region9: #{custom_model_forward.2} parent=5 // pred_check
      _
    $region10: #{custom_model_forward.2} parent=5 // pred_check_branch
      %174 = sbr.rel (%p171) target = $region12
    $region11: #{custom_model_forward.2} parent=5 // pred_region
      %s175 = ssub.s32 %s11, 1
      // Predicated region
      $region13: #{custom_model_forward.2} parent=11 // pred_check
        %p176 = pneg %p70
      $region14: #{custom_model_forward.2} parent=11 // pred_check_branch
        %178 = sbr.rel (%p176) target = $region16
      $region15: #{custom_model_forward.2} parent=11 // pred_region
        _
      $region16: #{custom_model_forward.2} parent=11 // pred_fallthru
        _
      // Predicated region
      $region17: #{custom_model_forward.2} parent=11 // pred_check
        %p179 = pneg %p91
      $region18: #{custom_model_forward.2} parent=11 // pred_check_branch
        %181 = sbr.rel (%p179) target = $region20
      $region19: #{custom_model_forward.2} parent=11 // pred_region
        _
      $region20: #{custom_model_forward.2} parent=11 // pred_fallthru
        _
      // Predicated region
      $region21: #{custom_model_forward.2} parent=11 // pred_check
        %p182 = pneg %p112
      $region22: #{custom_model_forward.2} parent=11 // pred_check_branch
        %184 = sbr.rel (%p182) target = $region24
      $region23: #{custom_model_forward.2} parent=11 // pred_region
        _
      $region24: #{custom_model_forward.2} parent=11 // pred_fallthru
        _
      // Predicated region
      $region25: #{custom_model_forward.2} parent=11 // pred_check
        %p185 = pneg %p133
      $region26: #{custom_model_forward.2} parent=11 // pred_check_branch
        %187 = sbr.rel (%p185) target = $region28
      $region27: #{custom_model_forward.2} parent=11 // pred_region
        _
      $region28: #{custom_model_forward.2} parent=11 // pred_fallthru
        _
    $region12: #{custom_model_forward.2} parent=5 // pred_fallthru
      _
    %p188 = scmp.lt.s32.totalorder %s11, 4
    // Predicated region
    $region29: #{custom_model_forward.2} parent=5 // pred_check
      %p189 = pneg %p188
    $region30: #{custom_model_forward.2} parent=5 // pred_check_branch
      %191 = sbr.rel (%p189) target = $region32
    $region31: #{custom_model_forward.2} parent=5 // pred_region
      // Predicated region
      $region33: #{custom_model_forward.2} parent=31 // pred_check
        %p192 = pneg %p43
      $region34: #{custom_model_forward.2} parent=31 // pred_check_branch
        %194 = sbr.rel (%p192) target = $region36
      $region35: #{custom_model_forward.2} parent=31 // pred_region
        %p195 = scmp.lt.s32.totalorder %s18, 1
        %s196 = scalar_select %p195, %s18, 1
        %s197 = smul.addr %s196, 54
        %s198 = smul.addr %s197, 4
        %s199 = scalar_lea.vmem %s0, %s198
      $region36: #{custom_model_forward.2} parent=31 // pred_fallthru
        _
    $region32: #{custom_model_forward.2} parent=5 // pred_fallthru
      _
    %p200 = scmp.le.s32.totalorder 1, %s11
    %p201 = scmp.lt.s32.totalorder %s11, 5
    %p202 = pnand %p200, %p201
    %p203 = pneg %p202
    // Predicated region
    $region37: #{custom_model_forward.2} parent=5 // pred_check
      _
    $region38: #{custom_model_forward.2} parent=5 // pred_check_branch
      %205 = sbr.rel (%p202) target = $region40
    $region39: #{custom_model_forward.2} parent=5 // pred_region
      %s206 = ssub.s32 %s11, 1
      %p207 = scmp.lt.s32.totalorder %s20, 1
      %s208 = scalar_select %p207, %s20, 1
      %s209 = smul.addr %s208, 54
      %s210 = smul.addr %s209, 4
      %s211 = scalar_lea.vmem %s0, %s210
      %p212 = pneg %p49
      %p213 = pneg %p46
      %p214 = pneg %p70
      %p215 = pneg %p67
      %p216 = pneg %p91
      %p217 = pneg %p88
      %p218 = pneg %p112
      %p219 = pneg %p109
      %p220 = pneg %p133
      %p221 = pneg %p130
      %p222 = pneg %p161
      %p223 = pneg %p158
      %p224 = scmp.lt.s32.totalorder %s20, 1
      %s225 = scalar_select %p224, %s20, 1
      %p226 = scmp.lt.s32.totalorder %s21, 1
      %s227 = scalar_select %p226, %s21, 1
      %s228 = smul.addr %s225, 2
      %s229 = sadd.s32 %s227, %s228
      %s230 = scalar_lea.vmem %s5, %s229
      %p231 = scmp.lt.s32.totalorder %s20, 1
      %s232 = scalar_select %p231, %s20, 1
      %s233 = smul.addr %s232, 54
      %s234 = smul.addr %s233, 4
      %s235 = scalar_lea.vmem %s0, %s234
      %p236 = scmp.lt.s32.totalorder %s20, 1
      %s237 = scalar_select %p236, %s20, 1
      %p238 = scmp.lt.s32.totalorder %s21, 1
      %s239 = scalar_select %p238, %s21, 1
      %s240 = smul.addr %s237, 2
      %s241 = sadd.s32 %s239, %s240
      %s242 = scalar_lea.vmem %s5, %s241
      %s244 = smul.u32 %s21, 8
      %s245 = smul.u32 %s244, 3
      %s246 = smul.addr %s245, 4
      %s247 = scalar_lea.vmem %s235, %s246
      %v248 = vld [vmem:[%s247] sm:$0xf]
      %v249 = vld [vmem:[%s247 + $0x4] sm:$0xf]
      %v250 = vld [vmem:[%s247 + $0x8] sm:$0x1]
      %v251 = vld [vmem:[%s247 + $0xc] sm:$0xf]
      %v252 = vld [vmem:[%s247 + $0x10] sm:$0xf]
      %v253 = vld [vmem:[%s247 + $0x14] sm:$0x1]
      %v254 = vld [vmem:[%s247 + $0x18] sm:$0xf]
      %v255 = vld [vmem:[%s247 + $0x1c] sm:$0xf]
      %v256 = vld [vmem:[%s247 + $0x20] sm:$0x1]
      %v257 = vld [vmem:[%s247 + $0x24] sm:$0xf]
      %v258 = vld [vmem:[%s247 + $0x28] sm:$0xf]
      %v259 = vld [vmem:[%s247 + $0x2c] sm:$0x1]
      %v260 = vld [vmem:[%s247 + $0x30] sm:$0xf]
      %v261 = vld [vmem:[%s247 + $0x34] sm:$0xf]
      %v262 = vld [vmem:[%s247 + $0x38] sm:$0x1]
      %v263 = vld [vmem:[%s247 + $0x3c] sm:$0xf]
      %v264 = vld [vmem:[%s247 + $0x40] sm:$0xf]
      %v265 = vld [vmem:[%s247 + $0x44] sm:$0x1]
      %v266 = vld [vmem:[%s247 + $0x48] sm:$0xf]
      %v267 = vld [vmem:[%s247 + $0x4c] sm:$0xf]
      %v268 = vld [vmem:[%s247 + $0x50] sm:$0x1]
      %v269 = vld [vmem:[%s247 + $0x54] sm:$0xf]
      %v270 = vld [vmem:[%s247 + $0x58] sm:$0xf]
      %v271 = vld [vmem:[%s247 + $0x5c] sm:$0x1]
      %v272 = vld [vmem:[%s247 + $0x60] sm:$0xf]
      %v273 = vld [vmem:[%s247 + $0x64] sm:$0xf]
      %v274 = vld [vmem:[%s247 + $0x68] sm:$0x1]
      %v275 = vld [vmem:[%s247 + $0x6c] sm:$0xf]
      %v276 = vld [vmem:[%s247 + $0x70] sm:$0xf]
      %v277 = vld [vmem:[%s247 + $0x74] sm:$0x1]
      %v278 = vld [vmem:[%s1] sm:$0x3]
      %vm279 = vsmask.f32 3328
      %vm280 = vsmask.f32 7440
      %vm281 = vmor %vm279, %vm280
      %v283 = vshrl.u32 %v248, 16
      %v285 = vrot.slane %v283, 4
      %v286 = vshll.u32 %v248, 16
      %v288 = vrot.slane %v286, 5
      %v289 = vor.u32 %v285, %v288
      %v290 = vrot.slane %v289, 4
      %v292 = vshll.u32 %v249, 16
      %v294 = vrot.slane %v292, 5
      %v295 = vsel %vm281, %v290, %v294
      %v296 = vshrl.u32 %v249, 16
      %v298 = vrot.slane %v296, 4
      %v299 = vor.u32 %v298, %v294
      %v300 = vrot.slane %v299, 4
      %v302 = vshll.u32 %v250, 16
      %v304 = vrot.slane %v302, 5
      %v305 = vsel %vm281, %v300, %v304
      %v307 = vshrl.u32 %v251, 16
      %v309 = vrot.slane %v307, 4
      %v310 = vshll.u32 %v251, 16
      %v312 = vrot.slane %v310, 5
      %v313 = vor.u32 %v309, %v312
      %v314 = vrot.slane %v313, 4
      %v316 = vshll.u32 %v252, 16
      %v318 = vrot.slane %v316, 5
      %v319 = vsel %vm281, %v314, %v318
      %v320 = vshrl.u32 %v252, 16
      %v322 = vrot.slane %v320, 4
      %v323 = vor.u32 %v322, %v318
      %v324 = vrot.slane %v323, 4
      %v326 = vshll.u32 %v253, 16
      %v328 = vrot.slane %v326, 5
      %v329 = vsel %vm281, %v324, %v328
      %v331 = vshrl.u32 %v254, 16
      %v333 = vrot.slane %v331, 4
      %v334 = vshll.u32 %v254, 16
      %v336 = vrot.slane %v334, 5
      %v337 = vor.u32 %v333, %v336
      %v338 = vrot.slane %v337, 4
      %v340 = vshll.u32 %v255, 16
      %v342 = vrot.slane %v340, 5
      %v343 = vsel %vm281, %v338, %v342
      %v344 = vshrl.u32 %v255, 16
      %v346 = vrot.slane %v344, 4
      %v347 = vor.u32 %v346, %v342
      %v348 = vrot.slane %v347, 4
      %v350 = vshll.u32 %v256, 16
      %v352 = vrot.slane %v350, 5
      %v353 = vsel %vm281, %v348, %v352
      %v355 = vshrl.u32 %v257, 16
      %v357 = vrot.slane %v355, 4
      %v358 = vshll.u32 %v257, 16
      %v360 = vrot.slane %v358, 5
      %v361 = vor.u32 %v357, %v360
      %v362 = vrot.slane %v361, 4
      %v364 = vshll.u32 %v258, 16
      %v366 = vrot.slane %v364, 5
      %v367 = vsel %vm281, %v362, %v366
      %v368 = vshrl.u32 %v258, 16
      %v370 = vrot.slane %v368, 4
      %v371 = vor.u32 %v370, %v366
      %v372 = vrot.slane %v371, 4
      %v374 = vshll.u32 %v259, 16
      %v376 = vrot.slane %v374, 5
      %v377 = vsel %vm281, %v372, %v376
      %v379 = vshrl.u32 %v260, 16
      %v381 = vrot.slane %v379, 4
      %v382 = vshll.u32 %v260, 16
      %v384 = vrot.slane %v382, 5
      %v385 = vor.u32 %v381, %v384
      %v386 = vrot.slane %v385, 4
      %v388 = vshll.u32 %v261, 16
      %v390 = vrot.slane %v388, 5
      %v391 = vsel %vm281, %v386, %v390
      %v392 = vshrl.u32 %v261, 16
      %v394 = vrot.slane %v392, 4
      %v395 = vor.u32 %v394, %v390
      %v396 = vrot.slane %v395, 4
      %v398 = vshll.u32 %v262, 16
      %v400 = vrot.slane %v398, 5
      %v401 = vsel %vm281, %v396, %v400
      %v403 = vshrl.u32 %v263, 16
      %v405 = vrot.slane %v403, 4
      %v406 = vshll.u32 %v263, 16
      %v408 = vrot.slane %v406, 5
      %v409 = vor.u32 %v405, %v408
      %v410 = vrot.slane %v409, 4
      %v412 = vshll.u32 %v264, 16
      %v414 = vrot.slane %v412, 5
      %v415 = vsel %vm281, %v410, %v414
      %v416 = vshrl.u32 %v264, 16
      %v418 = vrot.slane %v416, 4
      %v419 = vor.u32 %v418, %v414
      %v420 = vrot.slane %v419, 4
      %v422 = vshll.u32 %v265, 16
      %v424 = vrot.slane %v422, 5
      %v425 = vsel %vm281, %v420, %v424
      %v427 = vshrl.u32 %v266, 16
      %v429 = vrot.slane %v427, 4
      %v430 = vshll.u32 %v266, 16
      %v432 = vrot.slane %v430, 5
      %v433 = vor.u32 %v429, %v432
      %v434 = vrot.slane %v433, 4
      %v436 = vshll.u32 %v267, 16
      %v438 = vrot.slane %v436, 5
      %v439 = vsel %vm281, %v434, %v438
      %v440 = vshrl.u32 %v267, 16
      %v442 = vrot.slane %v440, 4
      %v443 = vor.u32 %v442, %v438
      %v444 = vrot.slane %v443, 4
      %v446 = vshll.u32 %v268, 16
      %v448 = vrot.slane %v446, 5
      %v449 = vsel %vm281, %v444, %v448
      %v451 = vshrl.u32 %v269, 16
      %v453 = vrot.slane %v451, 4
      %v454 = vshll.u32 %v269, 16
      %v456 = vrot.slane %v454, 5
      %v457 = vor.u32 %v453, %v456
      %v458 = vrot.slane %v457, 4
      %v460 = vshll.u32 %v270, 16
      %v462 = vrot.slane %v460, 5
      %v463 = vsel %vm281, %v458, %v462
      %v464 = vshrl.u32 %v270, 16
      %v466 = vrot.slane %v464, 4
      %v467 = vor.u32 %v466, %v462
      %v468 = vrot.slane %v467, 4
      %v470 = vshll.u32 %v271, 16
      %v472 = vrot.slane %v470, 5
      %v473 = vsel %vm281, %v468, %v472
      %s474 = scalar_lea.vmem %s1, 2
      %v475 = vld [vmem:[%s474] sm:$0x3]
      %v476 = vunpack.c.l.b16 %v295
      %v477 = vunpack.c.l.b16 %v305
      %v478 = vunpack.c.l.b16 %v319
      %v479 = vunpack.c.l.b16 %v329
      %v480 = vunpack.c.l.b16 %v343
      %v481 = vunpack.c.l.b16 %v353
      %v482 = vunpack.c.l.b16 %v367
      %v483 = vunpack.c.l.b16 %v377
      %v484 = vunpack.c.l.b16 %v391
      %v485 = vunpack.c.l.b16 %v401
      %v486 = vunpack.c.l.b16 %v415
      %v487 = vunpack.c.l.b16 %v425
      %v488 = vunpack.c.l.b16 %v439
      %v489 = vunpack.c.l.b16 %v449
      %v490 = vunpack.c.l.b16 %v463
      %v491 = vunpack.c.l.b16 %v473
      %v492 = vpack.c.b16 %v477, %v476
      %v493 = vpack.c.b16 %v479, %v478
      %v494 = vpack.c.b16 %v481, %v480
      %v495 = vpack.c.b16 %v483, %v482
      %v496 = vpack.c.b16 %v485, %v484
      %v497 = vpack.c.b16 %v487, %v486
      %v498 = vpack.c.b16 %v489, %v488
      %v499 = vpack.c.b16 %v491, %v490
      %vm500 = vcmask 23552
      %v502 = vsel %vm500, %v492, 0
      %v505 = vsel %vm500, %v493, 0
      %v508 = vsel %vm500, %v494, 0
      %v511 = vsel %vm500, %v495, 0
      %v514 = vsel %vm500, %v496, 0
      %v517 = vsel %vm500, %v497, 0
      %v520 = vsel %vm500, %v498, 0
      %v523 = vsel %vm500, %v499, 0
      %vm525 = vcmask 1040384
      %vm526 = vcmask 1041408
      %v527 = vsel %vm525, 4294967295, 65535
      %v528 = vsel %vm526, %v527, 0
      %v530 = vand.u32 %v475, %v528
      %532 = vmatprep.subr.bf16.mxu0 0
      %533 = vmatpush1.bf16.msra.mxu0 %v530
      %534 = vmatprep.subr.bf16.mxu0 0
      %535 = vmatpush1.bf16.msra.mxu0 0
      %536 = vmatprep.subr.bf16.mxu0 0
      %537 = vmatpush1.bf16.msra.mxu0 0
      %538 = vmatprep.subr.bf16.mxu0 0
      %539 = vmatpush1.bf16.msra.mxu0 0
      %540 = vmatprep.subr.bf16.mxu0 0
      %541 = vmatpush1.bf16.msra.mxu0 0
      %542 = vmatprep.subr.bf16.mxu0 0
      %543 = vmatpush1.bf16.msra.mxu0 0
      %544 = vmatprep.subr.bf16.mxu0 0
      %545 = vmatpush1.bf16.msra.mxu0 0
      %546 = vmatprep.subr.bf16.mxu0 0
      %547 = vmatpush1.bf16.msra.mxu0 0
      %548 = vmatprep.subr.bf16.mxu0 0
      %549 = vmatpush1.bf16.msra.mxu0 0
      %550 = vmatprep.subr.bf16.mxu0 0
      %551 = vmatpush1.bf16.msra.mxu0 0
      %552 = vmatprep.subr.bf16.mxu0 0
      %553 = vmatpush1.bf16.msra.mxu0 0
      %554 = vmatprep.subr.bf16.mxu0 0
      %555 = vmatpush1.bf16.msra.mxu0 0
      %556 = vmatprep.subr.bf16.mxu0 0
      %557 = vmatpush1.bf16.msra.mxu0 0
      %558 = vmatprep.subr.bf16.mxu0 0
      %559 = vmatpush1.bf16.msra.mxu0 0
      %560 = vmatprep.subr.bf16.mxu0 0
      %561 = vmatpush1.bf16.msra.mxu0 0
      %562 = vmatprep.subr.bf16.mxu0 0
      %563 = vmatpush1.bf16.msra.mxu0 0
      %564 = vmatprep.mubr.bf16.mxu0 0
      %565 = vmatmul.mubr.bf16.gmra.mrb[0].mxu0 %v502
      %v566 = vpop.f32.mrb[0].mxu0
      %v567 = vadd.f32 0.0, %v566
      %v568 = vpop.f32.mrb[0].mxu0
      %v569 = vpop.f32.mrb[0].mxu0
      %v570 = vadd.f32 0.0, %v569
      %v571 = vpop.f32.mrb[0].mxu0
      %572 = vmatprep.mubr.bf16.mxu0 0
      %573 = vmatmul.mubr.bf16.gmra.mrb[0].mxu0 %v505
      %v574 = vpop.f32.mrb[0].mxu0
      %v575 = vadd.f32 0.0, %v574
      %v576 = vpop.f32.mrb[0].mxu0
      %v577 = vpop.f32.mrb[0].mxu0
      %v578 = vadd.f32 0.0, %v577
      %v579 = vpop.f32.mrb[0].mxu0
      %580 = vmatprep.mubr.bf16.mxu0 0
      %581 = vmatmul.mubr.bf16.gmra.mrb[0].mxu0 %v508
      %v582 = vpop.f32.mrb[0].mxu0
      %v583 = vadd.f32 0.0, %v582
      %v584 = vpop.f32.mrb[0].mxu0
      %v585 = vpop.f32.mrb[0].mxu0
      %v586 = vadd.f32 0.0, %v585
      %v587 = vpop.f32.mrb[0].mxu0
      %588 = vmatprep.mubr.bf16.mxu0 0
      %589 = vmatmul.mubr.bf16.gmra.mrb[0].mxu0 %v511
      %v590 = vpop.f32.mrb[0].mxu0
      %v591 = vadd.f32 0.0, %v590
      %v592 = vpop.f32.mrb[0].mxu0
      %v593 = vpop.f32.mrb[0].mxu0
      %v594 = vadd.f32 0.0, %v593
      %v595 = vpop.f32.mrb[0].mxu0
      %596 = vmatprep.mubr.bf16.mxu0 0
      %597 = vmatmul.mubr.bf16.gmra.mrb[0].mxu0 %v514
      %v598 = vpop.f32.mrb[0].mxu0
      %v599 = vadd.f32 0.0, %v598
      %v600 = vpop.f32.mrb[0].mxu0
      %v601 = vpop.f32.mrb[0].mxu0
      %v602 = vadd.f32 0.0, %v601
      %v603 = vpop.f32.mrb[0].mxu0
      %604 = vmatprep.mubr.bf16.mxu0 0
      %605 = vmatmul.mubr.bf16.gmra.mrb[0].mxu0 %v517
      %v606 = vpop.f32.mrb[0].mxu0
      %v607 = vadd.f32 0.0, %v606
      %v608 = vpop.f32.mrb[0].mxu0
      %v609 = vpop.f32.mrb[0].mxu0
      %v610 = vadd.f32 0.0, %v609
      %v611 = vpop.f32.mrb[0].mxu0
      %612 = vmatprep.mubr.bf16.mxu0 0
      %613 = vmatmul.mubr.bf16.gmra.mrb[0].mxu0 %v520
      %v614 = vpop.f32.mrb[0].mxu0
      %v615 = vadd.f32 0.0, %v614
      %v616 = vpop.f32.mrb[0].mxu0
      %v617 = vpop.f32.mrb[0].mxu0
      %v618 = vadd.f32 0.0, %v617
      %v619 = vpop.f32.mrb[0].mxu0
      %620 = vmatprep.mubr.bf16.mxu0 0
      %621 = vmatmul.mubr.bf16.gmra.mrb[0].mxu0 %v523
      %v622 = vpop.f32.mrb[0].mxu0
      %v623 = vadd.f32 0.0, %v622
      %v624 = vpop.f32.mrb[0].mxu0
      %v625 = vpop.f32.mrb[0].mxu0
      %v626 = vadd.f32 0.0, %v625
      %v627 = vpop.f32.mrb[0].mxu0
      %628 = vdwg.mxu0
      %v645 = vunpack.c.l.b16 %v248
      %v646 = vunpack.c.l.b16 %v249
      %v647 = vunpack.c.l.b16 %v251
      %v648 = vunpack.c.l.b16 %v252
      %v649 = vunpack.c.l.b16 %v254
      %v650 = vunpack.c.l.b16 %v255
      %v651 = vunpack.c.l.b16 %v257
      %v652 = vunpack.c.l.b16 %v258
      %v653 = vunpack.c.l.b16 %v260
      %v654 = vunpack.c.l.b16 %v261
      %v655 = vunpack.c.l.b16 %v263
      %v656 = vunpack.c.l.b16 %v264
      %v657 = vunpack.c.l.b16 %v266
      %v658 = vunpack.c.l.b16 %v267
      %v659 = vunpack.c.l.b16 %v269
      %v660 = vunpack.c.l.b16 %v270
      %v661 = vpack.c.b16 %v646, %v645
      %v662 = vpack.c.b16 %v648, %v647
      %v663 = vpack.c.b16 %v650, %v649
      %v664 = vpack.c.b16 %v652, %v651
      %v665 = vpack.c.b16 %v654, %v653
      %v666 = vpack.c.b16 %v656, %v655
      %v667 = vpack.c.b16 %v658, %v657
      %v668 = vpack.c.b16 %v660, %v659
      %v670 = vsel %vm500, %v661, 0
      %v673 = vsel %vm500, %v662, 0
      %v676 = vsel %vm500, %v663, 0
      %v679 = vsel %vm500, %v664, 0
      %v682 = vsel %vm500, %v665, 0
      %v685 = vsel %vm500, %v666, 0
      %v688 = vsel %vm500, %v667, 0
      %v691 = vsel %vm500, %v668, 0
      %v694 = vand.u32 %v278, %v528
      %696 = vmatprep.subr.bf16.mxu0 0
      %697 = vmatpush1.bf16.msra.mxu0 %v694
      %698 = vmatprep.subr.bf16.mxu0 0
      %699 = vmatpush1.bf16.msra.mxu0 0
      %700 = vmatprep.subr.bf16.mxu0 0
      %701 = vmatpush1.bf16.msra.mxu0 0
      %702 = vmatprep.subr.bf16.mxu0 0
      %703 = vmatpush1.bf16.msra.mxu0 0
      %704 = vmatprep.subr.bf16.mxu0 0
      %705 = vmatpush1.bf16.msra.mxu0 0
      %706 = vmatprep.subr.bf16.mxu0 0
      %707 = vmatpush1.bf16.msra.mxu0 0
      %708 = vmatprep.subr.bf16.mxu0 0
      %709 = vmatpush1.bf16.msra.mxu0 0
      %710 = vmatprep.subr.bf16.mxu0 0
      %711 = vmatpush1.bf16.msra.mxu0 0
      %712 = vmatprep.subr.bf16.mxu0 0
      %713 = vmatpush1.bf16.msra.mxu0 0
      %714 = vmatprep.subr.bf16.mxu0 0
      %715 = vmatpush1.bf16.msra.mxu0 0
      %716 = vmatprep.subr.bf16.mxu0 0
      %717 = vmatpush1.bf16.msra.mxu0 0
      %718 = vmatprep.subr.bf16.mxu0 0
      %719 = vmatpush1.bf16.msra.mxu0 0
      %720 = vmatprep.subr.bf16.mxu0 0
      %721 = vmatpush1.bf16.msra.mxu0 0
      %722 = vmatprep.subr.bf16.mxu0 0
      %723 = vmatpush1.bf16.msra.mxu0 0
      %724 = vmatprep.subr.bf16.mxu0 0
      %725 = vmatpush1.bf16.msra.mxu0 0
      %726 = vmatprep.subr.bf16.mxu0 0
      %727 = vmatpush1.bf16.msra.mxu0 0
      %728 = vmatprep.mubr.bf16.mxu0 0
      %729 = vmatmul.mubr.bf16.gmra.mrb[0].mxu0 %v670
      %v730 = vpop.f32.mrb[0].mxu0
      %v731 = vadd.f32 %v567, %v730
      %v732 = vpop.f32.mrb[0].mxu0
      %v733 = vpop.f32.mrb[0].mxu0
      %v734 = vadd.f32 %v570, %v733
      %v735 = vpop.f32.mrb[0].mxu0
      %736 = vmatprep.mubr.bf16.mxu0 0
      %737 = vmatmul.mubr.bf16.gmra.mrb[0].mxu0 %v673
      %v738 = vpop.f32.mrb[0].mxu0
      %v739 = vadd.f32 %v575, %v738
      %v740 = vpop.f32.mrb[0].mxu0
      %v741 = vpop.f32.mrb[0].mxu0
      %v742 = vadd.f32 %v578, %v741
      %v743 = vpop.f32.mrb[0].mxu0
      %744 = vmatprep.mubr.bf16.mxu0 0
      %745 = vmatmul.mubr.bf16.gmra.mrb[0].mxu0 %v676
      %v746 = vpop.f32.mrb[0].mxu0
      %v747 = vadd.f32 %v583, %v746
      %v748 = vpop.f32.mrb[0].mxu0
      %v749 = vpop.f32.mrb[0].mxu0
      %v750 = vadd.f32 %v586, %v749
      %v751 = vpop.f32.mrb[0].mxu0
      %752 = vmatprep.mubr.bf16.mxu0 0
      %753 = vmatmul.mubr.bf16.gmra.mrb[0].mxu0 %v679
      %v754 = vpop.f32.mrb[0].mxu0
      %v755 = vadd.f32 %v591, %v754
      %v756 = vpop.f32.mrb[0].mxu0
      %v757 = vpop.f32.mrb[0].mxu0
      %v758 = vadd.f32 %v594, %v757
      %v759 = vpop.f32.mrb[0].mxu0
      %760 = vmatprep.mubr.bf16.mxu0 0
      %761 = vmatmul.mubr.bf16.gmra.mrb[0].mxu0 %v682
      %v762 = vpop.f32.mrb[0].mxu0
      %v763 = vadd.f32 %v599, %v762
      %v764 = vpop.f32.mrb[0].mxu0
      %v765 = vpop.f32.mrb[0].mxu0
      %v766 = vadd.f32 %v602, %v765
      %v767 = vpop.f32.mrb[0].mxu0
      %768 = vmatprep.mubr.bf16.mxu0 0
      %769 = vmatmul.mubr.bf16.gmra.mrb[0].mxu0 %v685
      %v770 = vpop.f32.mrb[0].mxu0
      %v771 = vadd.f32 %v607, %v770
      %v772 = vpop.f32.mrb[0].mxu0
      %v773 = vpop.f32.mrb[0].mxu0
      %v774 = vadd.f32 %v610, %v773
      %v775 = vpop.f32.mrb[0].mxu0
      %776 = vmatprep.mubr.bf16.mxu0 0
      %777 = vmatmul.mubr.bf16.gmra.mrb[0].mxu0 %v688
      %v778 = vpop.f32.mrb[0].mxu0
      %v779 = vadd.f32 %v615, %v778
      %v780 = vpop.f32.mrb[0].mxu0
      %v781 = vpop.f32.mrb[0].mxu0
      %v782 = vadd.f32 %v618, %v781
      %v783 = vpop.f32.mrb[0].mxu0
      %784 = vmatprep.mubr.bf16.mxu0 0
      %785 = vmatmul.mubr.bf16.gmra.mrb[0].mxu0 %v691
      %v786 = vpop.f32.mrb[0].mxu0
      %v787 = vadd.f32 %v623, %v786
      %v788 = vpop.f32.mrb[0].mxu0
      %v789 = vpop.f32.mrb[0].mxu0
      %v790 = vadd.f32 %v626, %v789
      %v791 = vpop.f32.mrb[0].mxu0
      %792 = vdwg.mxu0
      %vm801 = vcmask 1042432
      %vm802 = vcmask 1046532
      %vm803 = vmor %vm801, %vm802
      %v804 = vrot.slane %v248, 5
      %v805 = vrot.slane %v804, 4
      %v806 = vrot.slane %v249, 5
      %v807 = vsel %vm803, %v805, %v806
      %v808 = vrot.slane %v806, 4
      %v809 = vrot.slane %v250, 5
      %v810 = vsel %vm803, %v808, %v809
      %v811 = vrot.slane %v251, 5
      %v812 = vrot.slane %v811, 4
      %v813 = vrot.slane %v252, 5
      %v814 = vsel %vm803, %v812, %v813
      %v815 = vrot.slane %v813, 4
      %v816 = vrot.slane %v253, 5
      %v817 = vsel %vm803, %v815, %v816
      %v818 = vrot.slane %v254, 5
      %v819 = vrot.slane %v818, 4
      %v820 = vrot.slane %v255, 5
      %v821 = vsel %vm803, %v819, %v820
      %v822 = vrot.slane %v820, 4
      %v823 = vrot.slane %v256, 5
      %v824 = vsel %vm803, %v822, %v823
      %v825 = vrot.slane %v257, 5
      %v826 = vrot.slane %v825, 4
      %v827 = vrot.slane %v258, 5
      %v828 = vsel %vm803, %v826, %v827
      %v829 = vrot.slane %v827, 4
      %v830 = vrot.slane %v259, 5
      %v831 = vsel %vm803, %v829, %v830
      %v832 = vrot.slane %v260, 5
      %v833 = vrot.slane %v832, 4
      %v834 = vrot.slane %v261, 5
      %v835 = vsel %vm803, %v833, %v834
      %v836 = vrot.slane %v834, 4
      %v837 = vrot.slane %v262, 5
      %v838 = vsel %vm803, %v836, %v837
      %v839 = vrot.slane %v263, 5
      %v840 = vrot.slane %v839, 4
      %v841 = vrot.slane %v264, 5
      %v842 = vsel %vm803, %v840, %v841
      %v843 = vrot.slane %v841, 4
      %v844 = vrot.slane %v265, 5
      %v845 = vsel %vm803, %v843, %v844
      %v846 = vrot.slane %v266, 5
      %v847 = vrot.slane %v846, 4
      %v848 = vrot.slane %v267, 5
      %v849 = vsel %vm803, %v847, %v848
      %v850 = vrot.slane %v848, 4
      %v851 = vrot.slane %v268, 5
      %v852 = vsel %vm803, %v850, %v851
      %v853 = vrot.slane %v269, 5
      %v854 = vrot.slane %v853, 4
      %v855 = vrot.slane %v270, 5
      %v856 = vsel %vm803, %v854, %v855
      %v857 = vrot.slane %v855, 4
      %v858 = vrot.slane %v271, 5
      %v859 = vsel %vm803, %v857, %v858
      %s860 = scalar_lea.vmem %s1, 4
      %v861 = vld [vmem:[%s860] sm:$0x3]
      %v862 = vunpack.c.l.b16 %v807
      %v863 = vunpack.c.l.b16 %v810
      %v864 = vunpack.c.l.b16 %v814
      %v865 = vunpack.c.l.b16 %v817
      %v866 = vunpack.c.l.b16 %v821
      %v867 = vunpack.c.l.b16 %v824
      %v868 = vunpack.c.l.b16 %v828
      %v869 = vunpack.c.l.b16 %v831
      %v870 = vunpack.c.l.b16 %v835
      %v871 = vunpack.c.l.b16 %v838
      %v872 = vunpack.c.l.b16 %v842
      %v873 = vunpack.c.l.b16 %v845
      %v874 = vunpack.c.l.b16 %v849
      %v875 = vunpack.c.l.b16 %v852
      %v876 = vunpack.c.l.b16 %v856
      %v877 = vunpack.c.l.b16 %v859
      %v878 = vpack.c.b16 %v863, %v862
      %v879 = vpack.c.b16 %v865, %v864
      %v880 = vpack.c.b16 %v867, %v866
      %v881 = vpack.c.b16 %v869, %v868
      %v882 = vpack.c.b16 %v871, %v870
      %v883 = vpack.c.b16 %v873, %v872
      %v884 = vpack.c.b16 %v875, %v874
      %v885 = vpack.c.b16 %v877, %v876
      %v887 = vsel %vm500, %v878, 0
      %v890 = vsel %vm500, %v879, 0
      %v893 = vsel %vm500, %v880, 0
      %v896 = vsel %vm500, %v881, 0
      %v899 = vsel %vm500, %v882, 0
      %v902 = vsel %vm500, %v883, 0
      %v905 = vsel %vm500, %v884, 0
      %v908 = vsel %vm500, %v885, 0
      %v911 = vand.u32 %v861, %v528
      %913 = vmatprep.subr.bf16.mxu0 0
      %914 = vmatpush1.bf16.msra.mxu0 %v911
      %915 = vmatprep.subr.bf16.mxu0 0
      %916 = vmatpush1.bf16.msra.mxu0 0
      %917 = vmatprep.subr.bf16.mxu0 0
      %918 = vmatpush1.bf16.msra.mxu0 0
      %919 = vmatprep.subr.bf16.mxu0 0
      %920 = vmatpush1.bf16.msra.mxu0 0
      %921 = vmatprep.subr.bf16.mxu0 0
      %922 = vmatpush1.bf16.msra.mxu0 0
      %923 = vmatprep.subr.bf16.mxu0 0
      %924 = vmatpush1.bf16.msra.mxu0 0
      %925 = vmatprep.subr.bf16.mxu0 0
      %926 = vmatpush1.bf16.msra.mxu0 0
      %927 = vmatprep.subr.bf16.mxu0 0
      %928 = vmatpush1.bf16.msra.mxu0 0
      %929 = vmatprep.subr.bf16.mxu0 0
      %930 = vmatpush1.bf16.msra.mxu0 0
      %931 = vmatprep.subr.bf16.mxu0 0
      %932 = vmatpush1.bf16.msra.mxu0 0
      %933 = vmatprep.subr.bf16.mxu0 0
      %934 = vmatpush1.bf16.msra.mxu0 0
      %935 = vmatprep.subr.bf16.mxu0 0
      %936 = vmatpush1.bf16.msra.mxu0 0
      %937 = vmatprep.subr.bf16.mxu0 0
      %938 = vmatpush1.bf16.msra.mxu0 0
      %939 = vmatprep.subr.bf16.mxu0 0
      %940 = vmatpush1.bf16.msra.mxu0 0
      %941 = vmatprep.subr.bf16.mxu0 0
      %942 = vmatpush1.bf16.msra.mxu0 0
      %943 = vmatprep.subr.bf16.mxu0 0
      %944 = vmatpush1.bf16.msra.mxu0 0
      %945 = vmatprep.mubr.bf16.mxu0 0
      %946 = vmatmul.mubr.bf16.gmra.mrb[0].mxu0 %v887
      %v947 = vpop.f32.mrb[0].mxu0
      %v948 = vadd.f32 0.0, %v947
      %v949 = vpop.f32.mrb[0].mxu0
      %v950 = vpop.f32.mrb[0].mxu0
      %v951 = vadd.f32 0.0, %v950
      %v952 = vpop.f32.mrb[0].mxu0
      %953 = vmatprep.mubr.bf16.mxu0 0
      %954 = vmatmul.mubr.bf16.gmra.mrb[0].mxu0 %v890
      %v955 = vpop.f32.mrb[0].mxu0
      %v956 = vadd.f32 0.0, %v955
      %v957 = vpop.f32.mrb[0].mxu0
      %v958 = vpop.f32.mrb[0].mxu0
      %v959 = vadd.f32 0.0, %v958
      %v960 = vpop.f32.mrb[0].mxu0
      %961 = vmatprep.mubr.bf16.mxu0 0
      %962 = vmatmul.mubr.bf16.gmra.mrb[0].mxu0 %v893
      %v963 = vpop.f32.mrb[0].mxu0
      %v964 = vadd.f32 0.0, %v963
      %v965 = vpop.f32.mrb[0].mxu0
      %v966 = vpop.f32.mrb[0].mxu0
      %v967 = vadd.f32 0.0, %v966
      %v968 = vpop.f32.mrb[0].mxu0
      %969 = vmatprep.mubr.bf16.mxu0 0
      %970 = vmatmul.mubr.bf16.gmra.mrb[0].mxu0 %v896
      %v971 = vpop.f32.mrb[0].mxu0
      %v972 = vadd.f32 0.0, %v971
      %v973 = vpop.f32.mrb[0].mxu0
      %v974 = vpop.f32.mrb[0].mxu0
      %v975 = vadd.f32 0.0, %v974
      %v976 = vpop.f32.mrb[0].mxu0
      %977 = vmatprep.mubr.bf16.mxu0 0
      %978 = vmatmul.mubr.bf16.gmra.mrb[0].mxu0 %v899
      %v979 = vpop.f32.mrb[0].mxu0
      %v980 = vadd.f32 0.0, %v979
      %v981 = vpop.f32.mrb[0].mxu0
      %v982 = vpop.f32.mrb[0].mxu0
      %v983 = vadd.f32 0.0, %v982
      %v984 = vpop.f32.mrb[0].mxu0
      %985 = vmatprep.mubr.bf16.mxu0 0
      %986 = vmatmul.mubr.bf16.gmra.mrb[0].mxu0 %v902
      %v987 = vpop.f32.mrb[0].mxu0
      %v988 = vadd.f32 0.0, %v987
      %v989 = vpop.f32.mrb[0].mxu0
      %v990 = vpop.f32.mrb[0].mxu0
      %v991 = vadd.f32 0.0, %v990
      %v992 = vpop.f32.mrb[0].mxu0
      %993 = vmatprep.mubr.bf16.mxu0 0
      %994 = vmatmul.mubr.bf16.gmra.mrb[0].mxu0 %v905
      %v995 = vpop.f32.mrb[0].mxu0
      %v996 = vadd.f32 0.0, %v995
      %v997 = vpop.f32.mrb[0].mxu0
      %v998 = vpop.f32.mrb[0].mxu0
      %v999 = vadd.f32 0.0, %v998
      %v1000 = vpop.f32.mrb[0].mxu0
      %1001 = vmatprep.mubr.bf16.mxu0 0
      %1002 = vmatmul.mubr.bf16.gmra.mrb[0].mxu0 %v908
      %v1003 = vpop.f32.mrb[0].mxu0
      %v1004 = vadd.f32 0.0, %v1003
      %v1005 = vpop.f32.mrb[0].mxu0
      %v1006 = vpop.f32.mrb[0].mxu0
      %v1007 = vadd.f32 0.0, %v1006
      %v1008 = vpop.f32.mrb[0].mxu0
      %1009 = vdwg.mxu0
      %v1010 = vadd.f32 %v731, %v948
      %v1011 = vadd.f32 %v734, %v951
      %v1012 = vadd.f32 %v739, %v956
      %v1013 = vadd.f32 %v742, %v959
      %v1014 = vadd.f32 %v747, %v964
      %v1015 = vadd.f32 %v750, %v967
      %v1016 = vadd.f32 %v755, %v972
      %v1017 = vadd.f32 %v758, %v975
      %v1018 = vadd.f32 %v763, %v980
      %v1019 = vadd.f32 %v766, %v983
      %v1020 = vadd.f32 %v771, %v988
      %v1021 = vadd.f32 %v774, %v991
      %v1022 = vadd.f32 %v779, %v996
      %v1023 = vadd.f32 %v782, %v999
      %v1024 = vadd.f32 %v787, %v1004
      %v1025 = vadd.f32 %v790, %v1007
      %s1026 = scalar_lea.vmem %s1, 6
      %v1027 = vld [vmem:[%s1026] sm:$0x3]
      %v1030 = vunpack.c.l.b16 %v272
      %v1031 = vunpack.c.l.b16 %v273
      %v1032 = vpack.c.b16 %v1031, %v1030
      %v1034 = vsel %vm500, %v1032, 0
      %v1037 = vand.u32 %v1027, %v528
      %1039 = vmatprep.subr.bf16.mxu0 0
      %1040 = vmatpush1.bf16.msra.mxu0 %v1037
      %1041 = vmatprep.subr.bf16.mxu0 0
      %1042 = vmatpush1.bf16.msra.mxu0 0
      %1043 = vmatprep.subr.bf16.mxu0 0
      %1044 = vmatpush1.bf16.msra.mxu0 0
      %1045 = vmatprep.subr.bf16.mxu0 0
      %1046 = vmatpush1.bf16.msra.mxu0 0
      %1047 = vmatprep.subr.bf16.mxu0 0
      %1048 = vmatpush1.bf16.msra.mxu0 0
      %1049 = vmatprep.subr.bf16.mxu0 0
      %1050 = vmatpush1.bf16.msra.mxu0 0
      %1051 = vmatprep.subr.bf16.mxu0 0
      %1052 = vmatpush1.bf16.msra.mxu0 0
      %1053 = vmatprep.subr.bf16.mxu0 0
      %1054 = vmatpush1.bf16.msra.mxu0 0
      %1055 = vmatprep.subr.bf16.mxu0 0
      %1056 = vmatpush1.bf16.msra.mxu0 0
      %1057 = vmatprep.subr.bf16.mxu0 0
      %1058 = vmatpush1.bf16.msra.mxu0 0
      %1059 = vmatprep.subr.bf16.mxu0 0
      %1060 = vmatpush1.bf16.msra.mxu0 0
      %1061 = vmatprep.subr.bf16.mxu0 0
      %1062 = vmatpush1.bf16.msra.mxu0 0
      %1063 = vmatprep.subr.bf16.mxu0 0
      %1064 = vmatpush1.bf16.msra.mxu0 0
      %1065 = vmatprep.subr.bf16.mxu0 0
      %1066 = vmatpush1.bf16.msra.mxu0 0
      %1067 = vmatprep.subr.bf16.mxu0 0
      %1068 = vmatpush1.bf16.msra.mxu0 0
      %1069 = vmatprep.subr.bf16.mxu0 0
      %1070 = vmatpush1.bf16.msra.mxu0 0
      %1071 = vmatprep.mubr.bf16.mxu0 0
      %1072 = vmatmul.mubr.bf16.gmra.mrb[0].mxu0 %v673
      %v1073 = vpop.f32.mrb[0].mxu0
      %v1074 = vadd.f32 0.0, %v1073
      %v1075 = vpop.f32.mrb[0].mxu0
      %v1076 = vpop.f32.mrb[0].mxu0
      %v1077 = vadd.f32 0.0, %v1076
      %v1078 = vpop.f32.mrb[0].mxu0
      %1079 = vmatprep.mubr.bf16.mxu0 0
      %1080 = vmatmul.mubr.bf16.gmra.mrb[0].mxu0 %v676
      %v1081 = vpop.f32.mrb[0].mxu0
      %v1082 = vadd.f32 0.0, %v1081
      %v1083 = vpop.f32.mrb[0].mxu0
      %v1084 = vpop.f32.mrb[0].mxu0
      %v1085 = vadd.f32 0.0, %v1084
      %v1086 = vpop.f32.mrb[0].mxu0
      %1087 = vmatprep.mubr.bf16.mxu0 0
      %1088 = vmatmul.mubr.bf16.gmra.mrb[0].mxu0 %v679
      %v1089 = vpop.f32.mrb[0].mxu0
      %v1090 = vadd.f32 0.0, %v1089
      %v1091 = vpop.f32.mrb[0].mxu0
      %v1092 = vpop.f32.mrb[0].mxu0
      %v1093 = vadd.f32 0.0, %v1092
      %v1094 = vpop.f32.mrb[0].mxu0
      %1095 = vmatprep.mubr.bf16.mxu0 0
      %1096 = vmatmul.mubr.bf16.gmra.mrb[0].mxu0 %v682
      %v1097 = vpop.f32.mrb[0].mxu0
      %v1098 = vadd.f32 0.0, %v1097
      %v1099 = vpop.f32.mrb[0].mxu0
      %v1100 = vpop.f32.mrb[0].mxu0
      %v1101 = vadd.f32 0.0, %v1100
      %v1102 = vpop.f32.mrb[0].mxu0
      %1103 = vmatprep.mubr.bf16.mxu0 0
      %1104 = vmatmul.mubr.bf16.gmra.mrb[0].mxu0 %v685
      %v1105 = vpop.f32.mrb[0].mxu0
      %v1106 = vadd.f32 0.0, %v1105
      %v1107 = vpop.f32.mrb[0].mxu0
      %v1108 = vpop.f32.mrb[0].mxu0
      %v1109 = vadd.f32 0.0, %v1108
      %v1110 = vpop.f32.mrb[0].mxu0
      %1111 = vmatprep.mubr.bf16.mxu0 0
      %1112 = vmatmul.mubr.bf16.gmra.mrb[0].mxu0 %v688
      %v1113 = vpop.f32.mrb[0].mxu0
      %v1114 = vadd.f32 0.0, %v1113
      %v1115 = vpop.f32.mrb[0].mxu0
      %v1116 = vpop.f32.mrb[0].mxu0
      %v1117 = vadd.f32 0.0, %v1116
      %v1118 = vpop.f32.mrb[0].mxu0
      %1119 = vmatprep.mubr.bf16.mxu0 0
      %1120 = vmatmul.mubr.bf16.gmra.mrb[0].mxu0 %v691
      %v1121 = vpop.f32.mrb[0].mxu0
      %v1122 = vadd.f32 0.0, %v1121
      %v1123 = vpop.f32.mrb[0].mxu0
      %v1124 = vpop.f32.mrb[0].mxu0
      %v1125 = vadd.f32 0.0, %v1124
      %v1126 = vpop.f32.mrb[0].mxu0
      %1127 = vmatprep.mubr.bf16.mxu0 0
      %1128 = vmatmul.mubr.bf16.gmra.mrb[0].mxu0 %v1034
      %v1129 = vpop.f32.mrb[0].mxu0
      %v1130 = vadd.f32 0.0, %v1129
      %v1131 = vpop.f32.mrb[0].mxu0
      %v1132 = vpop.f32.mrb[0].mxu0
      %v1133 = vadd.f32 0.0, %v1132
      %v1134 = vpop.f32.mrb[0].mxu0
      %1135 = vdwg.mxu0
      %v1136 = vadd.f32 %v1010, %v1074
      %v1137 = vadd.f32 %v1011, %v1077
      %v1138 = vadd.f32 %v1012, %v1082
      %v1139 = vadd.f32 %v1013, %v1085
      %v1140 = vadd.f32 %v1014, %v1090
      %v1141 = vadd.f32 %v1015, %v1093
      %v1142 = vadd.f32 %v1016, %v1098
      %v1143 = vadd.f32 %v1017, %v1101
      %v1144 = vadd.f32 %v1018, %v1106
      %v1145 = vadd.f32 %v1019, %v1109
      %v1146 = vadd.f32 %v1020, %v1114
      %v1147 = vadd.f32 %v1021, %v1117
      %v1148 = vadd.f32 %v1022, %v1122
      %v1149 = vadd.f32 %v1023, %v1125
      %v1150 = vadd.f32 %v1024, %v1130
      %v1151 = vadd.f32 %v1025, %v1133
      %v1153 = vshrl.u32 %v272, 16
      %v1155 = vrot.slane %v1153, 4
      %v1156 = vshll.u32 %v272, 16
      %v1158 = vrot.slane %v1156, 5
      %v1159 = vor.u32 %v1155, %v1158
      %v1160 = vrot.slane %v1159, 4
      %v1162 = vshll.u32 %v273, 16
      %v1164 = vrot.slane %v1162, 5
      %v1165 = vsel %vm281, %v1160, %v1164
      %v1166 = vshrl.u32 %v273, 16
      %v1168 = vrot.slane %v1166, 4
      %v1169 = vor.u32 %v1168, %v1164
      %v1170 = vrot.slane %v1169, 4
      %v1172 = vshll.u32 %v274, 16
      %v1174 = vrot.slane %v1172, 5
      %v1175 = vsel %vm281, %v1170, %v1174
      %s1176 = scalar_lea.vmem %s1, 8
      %v1177 = vld [vmem:[%s1176] sm:$0x3]
      %v1178 = vunpack.c.l.b16 %v1165
      %v1179 = vunpack.c.l.b16 %v1175
      %v1180 = vpack.c.b16 %v1179, %v1178
      %v1182 = vsel %vm500, %v1180, 0
      %v1185 = vand.u32 %v1177, %v528
      %1187 = vmatprep.subr.bf16.mxu0 0
      %1188 = vmatpush1.bf16.msra.mxu0 %v1185
      %1189 = vmatprep.subr.bf16.mxu0 0
      %1190 = vmatpush1.bf16.msra.mxu0 0
      %1191 = vmatprep.subr.bf16.mxu0 0
      %1192 = vmatpush1.bf16.msra.mxu0 0
      %1193 = vmatprep.subr.bf16.mxu0 0
      %1194 = vmatpush1.bf16.msra.mxu0 0
      %1195 = vmatprep.subr.bf16.mxu0 0
      %1196 = vmatpush1.bf16.msra.mxu0 0
      %1197 = vmatprep.subr.bf16.mxu0 0
      %1198 = vmatpush1.bf16.msra.mxu0 0
      %1199 = vmatprep.subr.bf16.mxu0 0
      %1200 = vmatpush1.bf16.msra.mxu0 0
      %1201 = vmatprep.subr.bf16.mxu0 0
      %1202 = vmatpush1.bf16.msra.mxu0 0
      %1203 = vmatprep.subr.bf16.mxu0 0
      %1204 = vmatpush1.bf16.msra.mxu0 0
      %1205 = vmatprep.subr.bf16.mxu0 0
      %1206 = vmatpush1.bf16.msra.mxu0 0
      %1207 = vmatprep.subr.bf16.mxu0 0
      %1208 = vmatpush1.bf16.msra.mxu0 0
      %1209 = vmatprep.subr.bf16.mxu0 0
      %1210 = vmatpush1.bf16.msra.mxu0 0
      %1211 = vmatprep.subr.bf16.mxu0 0
      %1212 = vmatpush1.bf16.msra.mxu0 0
      %1213 = vmatprep.subr.bf16.mxu0 0
      %1214 = vmatpush1.bf16.msra.mxu0 0
      %1215 = vmatprep.subr.bf16.mxu0 0
      %1216 = vmatpush1.bf16.msra.mxu0 0
      %1217 = vmatprep.subr.bf16.mxu0 0
      %1218 = vmatpush1.bf16.msra.mxu0 0
      %1219 = vmatprep.mubr.bf16.mxu0 0
      %1220 = vmatmul.mubr.bf16.gmra.mrb[0].mxu0 %v505
      %v1221 = vpop.f32.mrb[0].mxu0
      %v1222 = vadd.f32 0.0, %v1221
      %v1223 = vpop.f32.mrb[0].mxu0
      %v1224 = vpop.f32.mrb[0].mxu0
      %v1225 = vadd.f32 0.0, %v1224
      %v1226 = vpop.f32.mrb[0].mxu0
      %1227 = vmatprep.mubr.bf16.mxu0 0
      %1228 = vmatmul.mubr.bf16.gmra.mrb[0].mxu0 %v508
      %v1229 = vpop.f32.mrb[0].mxu0
      %v1230 = vadd.f32 0.0, %v1229
      %v1231 = vpop.f32.mrb[0].mxu0
      %v1232 = vpop.f32.mrb[0].mxu0
      %v1233 = vadd.f32 0.0, %v1232
      %v1234 = vpop.f32.mrb[0].mxu0
      %1235 = vmatprep.mubr.bf16.mxu0 0
      %1236 = vmatmul.mubr.bf16.gmra.mrb[0].mxu0 %v511
      %v1237 = vpop.f32.mrb[0].mxu0
      %v1238 = vadd.f32 0.0, %v1237
      %v1239 = vpop.f32.mrb[0].mxu0
      %v1240 = vpop.f32.mrb[0].mxu0
      %v1241 = vadd.f32 0.0, %v1240
      %v1242 = vpop.f32.mrb[0].mxu0
      %1243 = vmatprep.mubr.bf16.mxu0 0
      %1244 = vmatmul.mubr.bf16.gmra.mrb[0].mxu0 %v514
      %v1245 = vpop.f32.mrb[0].mxu0
      %v1246 = vadd.f32 0.0, %v1245
      %v1247 = vpop.f32.mrb[0].mxu0
      %v1248 = vpop.f32.mrb[0].mxu0
      %v1249 = vadd.f32 0.0, %v1248
      %v1250 = vpop.f32.mrb[0].mxu0
      %1251 = vmatprep.mubr.bf16.mxu0 0
      %1252 = vmatmul.mubr.bf16.gmra.mrb[0].mxu0 %v517
      %v1253 = vpop.f32.mrb[0].mxu0
      %v1254 = vadd.f32 0.0, %v1253
      %v1255 = vpop.f32.mrb[0].mxu0
      %v1256 = vpop.f32.mrb[0].mxu0
      %v1257 = vadd.f32 0.0, %v1256
      %v1258 = vpop.f32.mrb[0].mxu0
      %1259 = vmatprep.mubr.bf16.mxu0 0
      %1260 = vmatmul.mubr.bf16.gmra.mrb[0].mxu0 %v520
      %v1261 = vpop.f32.mrb[0].mxu0
      %v1262 = vadd.f32 0.0, %v1261
      %v1263 = vpop.f32.mrb[0].mxu0
      %v1264 = vpop.f32.mrb[0].mxu0
      %v1265 = vadd.f32 0.0, %v1264
      %v1266 = vpop.f32.mrb[0].mxu0
      %1267 = vmatprep.mubr.bf16.mxu0 0
      %1268 = vmatmul.mubr.bf16.gmra.mrb[0].mxu0 %v523
      %v1269 = vpop.f32.mrb[0].mxu0
      %v1270 = vadd.f32 0.0, %v1269
      %v1271 = vpop.f32.mrb[0].mxu0
      %v1272 = vpop.f32.mrb[0].mxu0
      %v1273 = vadd.f32 0.0, %v1272
      %v1274 = vpop.f32.mrb[0].mxu0
      %1275 = vmatprep.mubr.bf16.mxu0 0
      %1276 = vmatmul.mubr.bf16.gmra.mrb[0].mxu0 %v1182
      %v1277 = vpop.f32.mrb[0].mxu0
      %v1278 = vadd.f32 0.0, %v1277
      %v1279 = vpop.f32.mrb[0].mxu0
      %v1280 = vpop.f32.mrb[0].mxu0
      %v1281 = vadd.f32 0.0, %v1280
      %v1282 = vpop.f32.mrb[0].mxu0
      %1283 = vdwg.mxu0
      %v1284 = vadd.f32 %v1136, %v1222
      %v1285 = vadd.f32 %v1137, %v1225
      %v1286 = vadd.f32 %v1138, %v1230
      %v1287 = vadd.f32 %v1139, %v1233
      %v1288 = vadd.f32 %v1140, %v1238
      %v1289 = vadd.f32 %v1141, %v1241
      %v1290 = vadd.f32 %v1142, %v1246
      %v1291 = vadd.f32 %v1143, %v1249
      %v1292 = vadd.f32 %v1144, %v1254
      %v1293 = vadd.f32 %v1145, %v1257
      %v1294 = vadd.f32 %v1146, %v1262
      %v1295 = vadd.f32 %v1147, %v1265
      %v1296 = vadd.f32 %v1148, %v1270
      %v1297 = vadd.f32 %v1149, %v1273
      %v1298 = vadd.f32 %v1150, %v1278
      %v1299 = vadd.f32 %v1151, %v1281
      %v1301 = vrot.slane %v272, 5
      %v1302 = vrot.slane %v1301, 4
      %v1303 = vrot.slane %v273, 5
      %v1304 = vsel %vm803, %v1302, %v1303
      %v1305 = vrot.slane %v1303, 4
      %v1306 = vrot.slane %v274, 5
      %v1307 = vsel %vm803, %v1305, %v1306
      %s1308 = scalar_lea.vmem %s1, 10
      %v1309 = vld [vmem:[%s1308] sm:$0x3]
      %v1310 = vunpack.c.l.b16 %v1304
      %v1311 = vunpack.c.l.b16 %v1307
      %v1312 = vpack.c.b16 %v1311, %v1310
      %v1314 = vsel %vm500, %v1312, 0
      %v1317 = vand.u32 %v1309, %v528
      %1319 = vmatprep.subr.bf16.mxu0 0
      %1320 = vmatpush1.bf16.msra.mxu0 %v1317
      %1321 = vmatprep.subr.bf16.mxu0 0
      %1322 = vmatpush1.bf16.msra.mxu0 0
      %1323 = vmatprep.subr.bf16.mxu0 0
      %1324 = vmatpush1.bf16.msra.mxu0 0
      %1325 = vmatprep.subr.bf16.mxu0 0
      %1326 = vmatpush1.bf16.msra.mxu0 0
      %1327 = vmatprep.subr.bf16.mxu0 0
      %1328 = vmatpush1.bf16.msra.mxu0 0
      %1329 = vmatprep.subr.bf16.mxu0 0
      %1330 = vmatpush1.bf16.msra.mxu0 0
      %1331 = vmatprep.subr.bf16.mxu0 0
      %1332 = vmatpush1.bf16.msra.mxu0 0
      %1333 = vmatprep.subr.bf16.mxu0 0
      %1334 = vmatpush1.bf16.msra.mxu0 0
      %1335 = vmatprep.subr.bf16.mxu0 0
      %1336 = vmatpush1.bf16.msra.mxu0 0
      %1337 = vmatprep.subr.bf16.mxu0 0
      %1338 = vmatpush1.bf16.msra.mxu0 0
      %1339 = vmatprep.subr.bf16.mxu0 0
      %1340 = vmatpush1.bf16.msra.mxu0 0
      %1341 = vmatprep.subr.bf16.mxu0 0
      %1342 = vmatpush1.bf16.msra.mxu0 0
      %1343 = vmatprep.subr.bf16.mxu0 0
      %1344 = vmatpush1.bf16.msra.mxu0 0
      %1345 = vmatprep.subr.bf16.mxu0 0
      %1346 = vmatpush1.bf16.msra.mxu0 0
      %1347 = vmatprep.subr.bf16.mxu0 0
      %1348 = vmatpush1.bf16.msra.mxu0 0
      %1349 = vmatprep.subr.bf16.mxu0 0
      %1350 = vmatpush1.bf16.msra.mxu0 0
      %1351 = vmatprep.mubr.bf16.mxu0 0
      %1352 = vmatmul.mubr.bf16.gmra.mrb[0].mxu0 %v890
      %v1353 = vpop.f32.mrb[0].mxu0
      %v1354 = vadd.f32 0.0, %v1353
      %v1355 = vpop.f32.mrb[0].mxu0
      %v1356 = vpop.f32.mrb[0].mxu0
      %v1357 = vadd.f32 0.0, %v1356
      %v1358 = vpop.f32.mrb[0].mxu0
      %1359 = vmatprep.mubr.bf16.mxu0 0
      %1360 = vmatmul.mubr.bf16.gmra.mrb[0].mxu0 %v893
      %v1361 = vpop.f32.mrb[0].mxu0
      %v1362 = vadd.f32 0.0, %v1361
      %v1363 = vpop.f32.mrb[0].mxu0
      %v1364 = vpop.f32.mrb[0].mxu0
      %v1365 = vadd.f32 0.0, %v1364
      %v1366 = vpop.f32.mrb[0].mxu0
      %1367 = vmatprep.mubr.bf16.mxu0 0
      %1368 = vmatmul.mubr.bf16.gmra.mrb[0].mxu0 %v896
      %v1369 = vpop.f32.mrb[0].mxu0
      %v1370 = vadd.f32 0.0, %v1369
      %v1371 = vpop.f32.mrb[0].mxu0
      %v1372 = vpop.f32.mrb[0].mxu0
      %v1373 = vadd.f32 0.0, %v1372
      %v1374 = vpop.f32.mrb[0].mxu0
      %1375 = vmatprep.mubr.bf16.mxu0 0
      %1376 = vmatmul.mubr.bf16.gmra.mrb[0].mxu0 %v899
      %v1377 = vpop.f32.mrb[0].mxu0
      %v1378 = vadd.f32 0.0, %v1377
      %v1379 = vpop.f32.mrb[0].mxu0
      %v1380 = vpop.f32.mrb[0].mxu0
      %v1381 = vadd.f32 0.0, %v1380
      %v1382 = vpop.f32.mrb[0].mxu0
      %1383 = vmatprep.mubr.bf16.mxu0 0
      %1384 = vmatmul.mubr.bf16.gmra.mrb[0].mxu0 %v902
      %v1385 = vpop.f32.mrb[0].mxu0
      %v1386 = vadd.f32 0.0, %v1385
      %v1387 = vpop.f32.mrb[0].mxu0
      %v1388 = vpop.f32.mrb[0].mxu0
      %v1389 = vadd.f32 0.0, %v1388
      %v1390 = vpop.f32.mrb[0].mxu0
      %1391 = vmatprep.mubr.bf16.mxu0 0
      %1392 = vmatmul.mubr.bf16.gmra.mrb[0].mxu0 %v905
      %v1393 = vpop.f32.mrb[0].mxu0
      %v1394 = vadd.f32 0.0, %v1393
      %v1395 = vpop.f32.mrb[0].mxu0
      %v1396 = vpop.f32.mrb[0].mxu0
      %v1397 = vadd.f32 0.0, %v1396
      %v1398 = vpop.f32.mrb[0].mxu0
      %1399 = vmatprep.mubr.bf16.mxu0 0
      %1400 = vmatmul.mubr.bf16.gmra.mrb[0].mxu0 %v908
      %v1401 = vpop.f32.mrb[0].mxu0
      %v1402 = vadd.f32 0.0, %v1401
      %v1403 = vpop.f32.mrb[0].mxu0
      %v1404 = vpop.f32.mrb[0].mxu0
      %v1405 = vadd.f32 0.0, %v1404
      %v1406 = vpop.f32.mrb[0].mxu0
      %1407 = vmatprep.mubr.bf16.mxu0 0
      %1408 = vmatmul.mubr.bf16.gmra.mrb[0].mxu0 %v1314
      %v1409 = vpop.f32.mrb[0].mxu0
      %v1410 = vadd.f32 0.0, %v1409
      %v1411 = vpop.f32.mrb[0].mxu0
      %v1412 = vpop.f32.mrb[0].mxu0
      %v1413 = vadd.f32 0.0, %v1412
      %v1414 = vpop.f32.mrb[0].mxu0
      %1415 = vdwg.mxu0
      %v1416 = vadd.f32 %v1284, %v1354
      %v1417 = vadd.f32 %v1285, %v1357
      %v1418 = vadd.f32 %v1286, %v1362
      %v1419 = vadd.f32 %v1287, %v1365
      %v1420 = vadd.f32 %v1288, %v1370
      %v1421 = vadd.f32 %v1289, %v1373
      %v1422 = vadd.f32 %v1290, %v1378
      %v1423 = vadd.f32 %v1291, %v1381
      %v1424 = vadd.f32 %v1292, %v1386
      %v1425 = vadd.f32 %v1293, %v1389
      %v1426 = vadd.f32 %v1294, %v1394
      %v1427 = vadd.f32 %v1295, %v1397
      %v1428 = vadd.f32 %v1296, %v1402
      %v1429 = vadd.f32 %v1297, %v1405
      %v1430 = vadd.f32 %v1298, %v1410
      %v1431 = vadd.f32 %v1299, %v1413
      %s1432 = scalar_lea.vmem %s1, 12
      %v1433 = vld [vmem:[%s1432] sm:$0x3]
      %v1436 = vunpack.c.l.b16 %v275
      %v1437 = vunpack.c.l.b16 %v276
      %v1438 = vpack.c.b16 %v1437, %v1436
      %v1440 = vsel %vm500, %v1438, 0
      %v1443 = vand.u32 %v1433, %v528
      %1445 = vmatprep.subr.bf16.mxu0 0
      %1446 = vmatpush1.bf16.msra.mxu0 %v1443
      %1447 = vmatprep.subr.bf16.mxu0 0
      %1448 = vmatpush1.bf16.msra.mxu0 0
      %1449 = vmatprep.subr.bf16.mxu0 0
      %1450 = vmatpush1.bf16.msra.mxu0 0
      %1451 = vmatprep.subr.bf16.mxu0 0
      %1452 = vmatpush1.bf16.msra.mxu0 0
      %1453 = vmatprep.subr.bf16.mxu0 0
      %1454 = vmatpush1.bf16.msra.mxu0 0
      %1455 = vmatprep.subr.bf16.mxu0 0
      %1456 = vmatpush1.bf16.msra.mxu0 0
      %1457 = vmatprep.subr.bf16.mxu0 0
      %1458 = vmatpush1.bf16.msra.mxu0 0
      %1459 = vmatprep.subr.bf16.mxu0 0
      %1460 = vmatpush1.bf16.msra.mxu0 0
      %1461 = vmatprep.subr.bf16.mxu0 0
      %1462 = vmatpush1.bf16.msra.mxu0 0
      %1463 = vmatprep.subr.bf16.mxu0 0
      %1464 = vmatpush1.bf16.msra.mxu0 0
      %1465 = vmatprep.subr.bf16.mxu0 0
      %1466 = vmatpush1.bf16.msra.mxu0 0
      %1467 = vmatprep.subr.bf16.mxu0 0
      %1468 = vmatpush1.bf16.msra.mxu0 0
      %1469 = vmatprep.subr.bf16.mxu0 0
      %1470 = vmatpush1.bf16.msra.mxu0 0
      %1471 = vmatprep.subr.bf16.mxu0 0
      %1472 = vmatpush1.bf16.msra.mxu0 0
      %1473 = vmatprep.subr.bf16.mxu0 0
      %1474 = vmatpush1.bf16.msra.mxu0 0
      %1475 = vmatprep.subr.bf16.mxu0 0
      %1476 = vmatpush1.bf16.msra.mxu0 0
      %1477 = vmatprep.mubr.bf16.mxu0 0
      %1478 = vmatmul.mubr.bf16.gmra.mrb[0].mxu0 %v676
      %v1479 = vpop.f32.mrb[0].mxu0
      %v1480 = vadd.f32 0.0, %v1479
      %v1481 = vpop.f32.mrb[0].mxu0
      %v1482 = vpop.f32.mrb[0].mxu0
      %v1483 = vadd.f32 0.0, %v1482
      %v1484 = vpop.f32.mrb[0].mxu0
      %1485 = vmatprep.mubr.bf16.mxu0 0
      %1486 = vmatmul.mubr.bf16.gmra.mrb[0].mxu0 %v679
      %v1487 = vpop.f32.mrb[0].mxu0
      %v1488 = vadd.f32 0.0, %v1487
      %v1489 = vpop.f32.mrb[0].mxu0
      %v1490 = vpop.f32.mrb[0].mxu0
      %v1491 = vadd.f32 0.0, %v1490
      %v1492 = vpop.f32.mrb[0].mxu0
      %1493 = vmatprep.mubr.bf16.mxu0 0
      %1494 = vmatmul.mubr.bf16.gmra.mrb[0].mxu0 %v682
      %v1495 = vpop.f32.mrb[0].mxu0
      %v1496 = vadd.f32 0.0, %v1495
      %v1497 = vpop.f32.mrb[0].mxu0
      %v1498 = vpop.f32.mrb[0].mxu0
      %v1499 = vadd.f32 0.0, %v1498
      %v1500 = vpop.f32.mrb[0].mxu0
      %1501 = vmatprep.mubr.bf16.mxu0 0
      %1502 = vmatmul.mubr.bf16.gmra.mrb[0].mxu0 %v685
      %v1503 = vpop.f32.mrb[0].mxu0
      %v1504 = vadd.f32 0.0, %v1503
      %v1505 = vpop.f32.mrb[0].mxu0
      %v1506 = vpop.f32.mrb[0].mxu0
      %v1507 = vadd.f32 0.0, %v1506
      %v1508 = vpop.f32.mrb[0].mxu0
      %1509 = vmatprep.mubr.bf16.mxu0 0
      %1510 = vmatmul.mubr.bf16.gmra.mrb[0].mxu0 %v688
      %v1511 = vpop.f32.mrb[0].mxu0
      %v1512 = vadd.f32 0.0, %v1511
      %v1513 = vpop.f32.mrb[0].mxu0
      %v1514 = vpop.f32.mrb[0].mxu0
      %v1515 = vadd.f32 0.0, %v1514
      %v1516 = vpop.f32.mrb[0].mxu0
      %1517 = vmatprep.mubr.bf16.mxu0 0
      %1518 = vmatmul.mubr.bf16.gmra.mrb[0].mxu0 %v691
      %v1519 = vpop.f32.mrb[0].mxu0
      %v1520 = vadd.f32 0.0, %v1519
      %v1521 = vpop.f32.mrb[0].mxu0
      %v1522 = vpop.f32.mrb[0].mxu0
      %v1523 = vadd.f32 0.0, %v1522
      %v1524 = vpop.f32.mrb[0].mxu0
      %1525 = vmatprep.mubr.bf16.mxu0 0
      %1526 = vmatmul.mubr.bf16.gmra.mrb[0].mxu0 %v1034
      %v1527 = vpop.f32.mrb[0].mxu0
      %v1528 = vadd.f32 0.0, %v1527
      %v1529 = vpop.f32.mrb[0].mxu0
      %v1530 = vpop.f32.mrb[0].mxu0
      %v1531 = vadd.f32 0.0, %v1530
      %v1532 = vpop.f32.mrb[0].mxu0
      %1533 = vmatprep.mubr.bf16.mxu0 0
      %1534 = vmatmul.mubr.bf16.gmra.mrb[0].mxu0 %v1440
      %v1535 = vpop.f32.mrb[0].mxu0
      %v1536 = vadd.f32 0.0, %v1535
      %v1537 = vpop.f32.mrb[0].mxu0
      %v1538 = vpop.f32.mrb[0].mxu0
      %v1539 = vadd.f32 0.0, %v1538
      %v1540 = vpop.f32.mrb[0].mxu0
      %1541 = vdwg.mxu0
      %v1542 = vadd.f32 %v1416, %v1480
      %v1543 = vadd.f32 %v1417, %v1483
      %v1544 = vadd.f32 %v1418, %v1488
      %v1545 = vadd.f32 %v1419, %v1491
      %v1546 = vadd.f32 %v1420, %v1496
      %v1547 = vadd.f32 %v1421, %v1499
      %v1548 = vadd.f32 %v1422, %v1504
      %v1549 = vadd.f32 %v1423, %v1507
      %v1550 = vadd.f32 %v1424, %v1512
      %v1551 = vadd.f32 %v1425, %v1515
      %v1552 = vadd.f32 %v1426, %v1520
      %v1553 = vadd.f32 %v1427, %v1523
      %v1554 = vadd.f32 %v1428, %v1528
      %v1555 = vadd.f32 %v1429, %v1531
      %v1556 = vadd.f32 %v1430, %v1536
      %v1557 = vadd.f32 %v1431, %v1539
      %v1559 = vshrl.u32 %v275, 16
      %v1561 = vrot.slane %v1559, 4
      %v1562 = vshll.u32 %v275, 16
      %v1564 = vrot.slane %v1562, 5
      %v1565 = vor.u32 %v1561, %v1564
      %v1566 = vrot.slane %v1565, 4
      %v1568 = vshll.u32 %v276, 16
      %v1570 = vrot.slane %v1568, 5
      %v1571 = vsel %vm281, %v1566, %v1570
      %v1572 = vshrl.u32 %v276, 16
      %v1574 = vrot.slane %v1572, 4
      %v1575 = vor.u32 %v1574, %v1570
      %v1576 = vrot.slane %v1575, 4
      %v1578 = vshll.u32 %v277, 16
      %v1580 = vrot.slane %v1578, 5
      %v1581 = vsel %vm281, %v1576, %v1580
      %s1582 = scalar_lea.vmem %s1, 14
      %v1583 = vld [vmem:[%s1582] sm:$0x3]
      %v1584 = vunpack.c.l.b16 %v1571
      %v1585 = vunpack.c.l.b16 %v1581
      %v1586 = vpack.c.b16 %v1585, %v1584
      %v1588 = vsel %vm500, %v1586, 0
      %v1591 = vand.u32 %v1583, %v528
      %1593 = vmatprep.subr.bf16.mxu0 0
      %1594 = vmatpush1.bf16.msra.mxu0 %v1591
      %1595 = vmatprep.subr.bf16.mxu0 0
      %1596 = vmatpush1.bf16.msra.mxu0 0
      %1597 = vmatprep.subr.bf16.mxu0 0
      %1598 = vmatpush1.bf16.msra.mxu0 0
      %1599 = vmatprep.subr.bf16.mxu0 0
      %1600 = vmatpush1.bf16.msra.mxu0 0
      %1601 = vmatprep.subr.bf16.mxu0 0
      %1602 = vmatpush1.bf16.msra.mxu0 0
      %1603 = vmatprep.subr.bf16.mxu0 0
      %1604 = vmatpush1.bf16.msra.mxu0 0
      %1605 = vmatprep.subr.bf16.mxu0 0
      %1606 = vmatpush1.bf16.msra.mxu0 0
      %1607 = vmatprep.subr.bf16.mxu0 0
      %1608 = vmatpush1.bf16.msra.mxu0 0
      %1609 = vmatprep.subr.bf16.mxu0 0
      %1610 = vmatpush1.bf16.msra.mxu0 0
      %1611 = vmatprep.subr.bf16.mxu0 0
      %1612 = vmatpush1.bf16.msra.mxu0 0
      %1613 = vmatprep.subr.bf16.mxu0 0
      %1614 = vmatpush1.bf16.msra.mxu0 0
      %1615 = vmatprep.subr.bf16.mxu0 0
      %1616 = vmatpush1.bf16.msra.mxu0 0
      %1617 = vmatprep.subr.bf16.mxu0 0
      %1618 = vmatpush1.bf16.msra.mxu0 0
      %1619 = vmatprep.subr.bf16.mxu0 0
      %1620 = vmatpush1.bf16.msra.mxu0 0
      %1621 = vmatprep.subr.bf16.mxu0 0
      %1622 = vmatpush1.bf16.msra.mxu0 0
      %1623 = vmatprep.subr.bf16.mxu0 0
      %1624 = vmatpush1.bf16.msra.mxu0 0
      %1625 = vmatprep.mubr.bf16.mxu0 0
      %1626 = vmatmul.mubr.bf16.gmra.mrb[0].mxu0 %v508
      %v1627 = vpop.f32.mrb[0].mxu0
      %v1628 = vadd.f32 0.0, %v1627
      %v1629 = vpop.f32.mrb[0].mxu0
      %v1630 = vpop.f32.mrb[0].mxu0
      %v1631 = vadd.f32 0.0, %v1630
      %v1632 = vpop.f32.mrb[0].mxu0
      %1633 = vmatprep.mubr.bf16.mxu0 0
      %1634 = vmatmul.mubr.bf16.gmra.mrb[0].mxu0 %v511
      %v1635 = vpop.f32.mrb[0].mxu0
      %v1636 = vadd.f32 0.0, %v1635
      %v1637 = vpop.f32.mrb[0].mxu0
      %v1638 = vpop.f32.mrb[0].mxu0
      %v1639 = vadd.f32 0.0, %v1638
      %v1640 = vpop.f32.mrb[0].mxu0
      %1641 = vmatprep.mubr.bf16.mxu0 0
      %1642 = vmatmul.mubr.bf16.gmra.mrb[0].mxu0 %v514
      %v1643 = vpop.f32.mrb[0].mxu0
      %v1644 = vadd.f32 0.0, %v1643
      %v1645 = vpop.f32.mrb[0].mxu0
      %v1646 = vpop.f32.mrb[0].mxu0
      %v1647 = vadd.f32 0.0, %v1646
      %v1648 = vpop.f32.mrb[0].mxu0
      %1649 = vmatprep.mubr.bf16.mxu0 0
      %1650 = vmatmul.mubr.bf16.gmra.mrb[0].mxu0 %v517
      %v1651 = vpop.f32.mrb[0].mxu0
      %v1652 = vadd.f32 0.0, %v1651
      %v1653 = vpop.f32.mrb[0].mxu0
      %v1654 = vpop.f32.mrb[0].mxu0
      %v1655 = vadd.f32 0.0, %v1654
      %v1656 = vpop.f32.mrb[0].mxu0
      %1657 = vmatprep.mubr.bf16.mxu0 0
      %1658 = vmatmul.mubr.bf16.gmra.mrb[0].mxu0 %v520
      %v1659 = vpop.f32.mrb[0].mxu0
      %v1660 = vadd.f32 0.0, %v1659
      %v1661 = vpop.f32.mrb[0].mxu0
      %v1662 = vpop.f32.mrb[0].mxu0
      %v1663 = vadd.f32 0.0, %v1662
      %v1664 = vpop.f32.mrb[0].mxu0
      %1665 = vmatprep.mubr.bf16.mxu0 0
      %1666 = vmatmul.mubr.bf16.gmra.mrb[0].mxu0 %v523
      %v1667 = vpop.f32.mrb[0].mxu0
      %v1668 = vadd.f32 0.0, %v1667
      %v1669 = vpop.f32.mrb[0].mxu0
      %v1670 = vpop.f32.mrb[0].mxu0
      %v1671 = vadd.f32 0.0, %v1670
      %v1672 = vpop.f32.mrb[0].mxu0
      %1673 = vmatprep.mubr.bf16.mxu0 0
      %1674 = vmatmul.mubr.bf16.gmra.mrb[0].mxu0 %v1182
      %v1675 = vpop.f32.mrb[0].mxu0
      %v1676 = vadd.f32 0.0, %v1675
      %v1677 = vpop.f32.mrb[0].mxu0
      %v1678 = vpop.f32.mrb[0].mxu0
      %v1679 = vadd.f32 0.0, %v1678
      %v1680 = vpop.f32.mrb[0].mxu0
      %1681 = vmatprep.mubr.bf16.mxu0 0
      %1682 = vmatmul.mubr.bf16.gmra.mrb[0].mxu0 %v1588
      %v1683 = vpop.f32.mrb[0].mxu0
      %v1684 = vadd.f32 0.0, %v1683
      %v1685 = vpop.f32.mrb[0].mxu0
      %v1686 = vpop.f32.mrb[0].mxu0
      %v1687 = vadd.f32 0.0, %v1686
      %v1688 = vpop.f32.mrb[0].mxu0
      %1689 = vdwg.mxu0
      %v1690 = vadd.f32 %v1542, %v1628
      %v1691 = vadd.f32 %v1543, %v1631
      %v1692 = vadd.f32 %v1544, %v1636
      %v1693 = vadd.f32 %v1545, %v1639
      %v1694 = vadd.f32 %v1546, %v1644
      %v1695 = vadd.f32 %v1547, %v1647
      %v1696 = vadd.f32 %v1548, %v1652
      %v1697 = vadd.f32 %v1549, %v1655
      %v1698 = vadd.f32 %v1550, %v1660
      %v1699 = vadd.f32 %v1551, %v1663
      %v1700 = vadd.f32 %v1552, %v1668
      %v1701 = vadd.f32 %v1553, %v1671
      %v1702 = vadd.f32 %v1554, %v1676
      %v1703 = vadd.f32 %v1555, %v1679
      %v1704 = vadd.f32 %v1556, %v1684
      %v1705 = vadd.f32 %v1557, %v1687
      %v1707 = vrot.slane %v275, 5
      %v1708 = vrot.slane %v1707, 4
      %v1709 = vrot.slane %v276, 5
      %v1710 = vsel %vm803, %v1708, %v1709
      %v1711 = vrot.slane %v1709, 4
      %v1712 = vrot.slane %v277, 5
      %v1713 = vsel %vm803, %v1711, %v1712
      %s1714 = scalar_lea.vmem %s1, 16
      %v1715 = vld [vmem:[%s1714] sm:$0x3]
      %v1716 = vunpack.c.l.b16 %v1710
      %v1717 = vunpack.c.l.b16 %v1713
      %v1718 = vpack.c.b16 %v1717, %v1716
      %v1720 = vsel %vm500, %v1718, 0
      %v1723 = vand.u32 %v1715, %v528
      %1725 = vmatprep.subr.bf16.mxu0 0
      %1726 = vmatpush1.bf16.msra.mxu0 %v1723
      %1727 = vmatprep.subr.bf16.mxu0 0
      %1728 = vmatpush1.bf16.msra.mxu0 0
      %1729 = vmatprep.subr.bf16.mxu0 0
      %1730 = vmatpush1.bf16.msra.mxu0 0
      %1731 = vmatprep.subr.bf16.mxu0 0
      %1732 = vmatpush1.bf16.msra.mxu0 0
      %1733 = vmatprep.subr.bf16.mxu0 0
      %1734 = vmatpush1.bf16.msra.mxu0 0
      %1735 = vmatprep.subr.bf16.mxu0 0
      %1736 = vmatpush1.bf16.msra.mxu0 0
      %1737 = vmatprep.subr.bf16.mxu0 0
      %1738 = vmatpush1.bf16.msra.mxu0 0
      %1739 = vmatprep.subr.bf16.mxu0 0
      %1740 = vmatpush1.bf16.msra.mxu0 0
      %1741 = vmatprep.subr.bf16.mxu0 0
      %1742 = vmatpush1.bf16.msra.mxu0 0
      %1743 = vmatprep.subr.bf16.mxu0 0
      %1744 = vmatpush1.bf16.msra.mxu0 0
      %1745 = vmatprep.subr.bf16.mxu0 0
      %1746 = vmatpush1.bf16.msra.mxu0 0
      %1747 = vmatprep.subr.bf16.mxu0 0
      %1748 = vmatpush1.bf16.msra.mxu0 0
      %1749 = vmatprep.subr.bf16.mxu0 0
      %1750 = vmatpush1.bf16.msra.mxu0 0
      %1751 = vmatprep.subr.bf16.mxu0 0
      %1752 = vmatpush1.bf16.msra.mxu0 0
      %1753 = vmatprep.subr.bf16.mxu0 0
      %1754 = vmatpush1.bf16.msra.mxu0 0
      %1755 = vmatprep.subr.bf16.mxu0 0
      %1756 = vmatpush1.bf16.msra.mxu0 0
      %1757 = vmatprep.mubr.bf16.mxu0 0
      %1758 = vmatmul.mubr.bf16.gmra.mrb[0].mxu0 %v893
      %v1759 = vpop.f32.mrb[0].mxu0
      %v1760 = vadd.f32 0.0, %v1759
      %v1761 = vpop.f32.mrb[0].mxu0
      %v1762 = vpop.f32.mrb[0].mxu0
      %v1763 = vadd.f32 0.0, %v1762
      %v1764 = vpop.f32.mrb[0].mxu0
      %1765 = vmatprep.mubr.bf16.mxu0 0
      %1766 = vmatmul.mubr.bf16.gmra.mrb[0].mxu0 %v896
      %v1767 = vpop.f32.mrb[0].mxu0
      %v1768 = vadd.f32 0.0, %v1767
      %v1769 = vpop.f32.mrb[0].mxu0
      %v1770 = vpop.f32.mrb[0].mxu0
      %v1771 = vadd.f32 0.0, %v1770
      %v1772 = vpop.f32.mrb[0].mxu0
      %1773 = vmatprep.mubr.bf16.mxu0 0
      %1774 = vmatmul.mubr.bf16.gmra.mrb[0].mxu0 %v899
      %v1775 = vpop.f32.mrb[0].mxu0
      %v1776 = vadd.f32 0.0, %v1775
      %v1777 = vpop.f32.mrb[0].mxu0
      %v1778 = vpop.f32.mrb[0].mxu0
      %v1779 = vadd.f32 0.0, %v1778
      %v1780 = vpop.f32.mrb[0].mxu0
      %1781 = vmatprep.mubr.bf16.mxu0 0
      %1782 = vmatmul.mubr.bf16.gmra.mrb[0].mxu0 %v902
      %v1783 = vpop.f32.mrb[0].mxu0
      %v1784 = vadd.f32 0.0, %v1783
      %v1785 = vpop.f32.mrb[0].mxu0
      %v1786 = vpop.f32.mrb[0].mxu0
      %v1787 = vadd.f32 0.0, %v1786
      %v1788 = vpop.f32.mrb[0].mxu0
      %1789 = vmatprep.mubr.bf16.mxu0 0
      %1790 = vmatmul.mubr.bf16.gmra.mrb[0].mxu0 %v905
      %v1791 = vpop.f32.mrb[0].mxu0
      %v1792 = vadd.f32 0.0, %v1791
      %v1793 = vpop.f32.mrb[0].mxu0
      %v1794 = vpop.f32.mrb[0].mxu0
      %v1795 = vadd.f32 0.0, %v1794
      %v1796 = vpop.f32.mrb[0].mxu0
      %1797 = vmatprep.mubr.bf16.mxu0 0
      %1798 = vmatmul.mubr.bf16.gmra.mrb[0].mxu0 %v908
      %v1799 = vpop.f32.mrb[0].mxu0
      %v1800 = vadd.f32 0.0, %v1799
      %v1801 = vpop.f32.mrb[0].mxu0
      %v1802 = vpop.f32.mrb[0].mxu0
      %v1803 = vadd.f32 0.0, %v1802
      %v1804 = vpop.f32.mrb[0].mxu0
      %1805 = vmatprep.mubr.bf16.mxu0 0
      %1806 = vmatmul.mubr.bf16.gmra.mrb[0].mxu0 %v1314
      %v1807 = vpop.f32.mrb[0].mxu0
      %v1808 = vadd.f32 0.0, %v1807
      %v1809 = vpop.f32.mrb[0].mxu0
      %v1810 = vpop.f32.mrb[0].mxu0
      %v1811 = vadd.f32 0.0, %v1810
      %v1812 = vpop.f32.mrb[0].mxu0
      %1813 = vmatprep.mubr.bf16.mxu0 0
      %1814 = vmatmul.mubr.bf16.gmra.mrb[0].mxu0 %v1720
      %v1815 = vpop.f32.mrb[0].mxu0
      %v1816 = vadd.f32 0.0, %v1815
      %v1817 = vpop.f32.mrb[0].mxu0
      %v1818 = vpop.f32.mrb[0].mxu0
      %v1819 = vadd.f32 0.0, %v1818
      %v1820 = vpop.f32.mrb[0].mxu0
      %1821 = vdwg.mxu0
      %v1822 = vadd.f32 %v1690, %v1760
      %v1823 = vadd.f32 %v1691, %v1763
      %v1824 = vadd.f32 %v1692, %v1768
      %v1825 = vadd.f32 %v1693, %v1771
      %v1826 = vadd.f32 %v1694, %v1776
      %v1827 = vadd.f32 %v1695, %v1779
      %v1828 = vadd.f32 %v1696, %v1784
      %v1829 = vadd.f32 %v1697, %v1787
      %v1830 = vadd.f32 %v1698, %v1792
      %v1831 = vadd.f32 %v1699, %v1795
      %v1832 = vadd.f32 %v1700, %v1800
      %v1833 = vadd.f32 %v1701, %v1803
      %v1834 = vadd.f32 %v1702, %v1808
      %v1835 = vadd.f32 %v1703, %v1811
      %v1836 = vadd.f32 %v1704, %v1816
      %v1837 = vadd.f32 %v1705, %v1819
      %v1838 = vld [vmem:[%s2] sm:$0x1]
      %v1840 = vlaneseq
      %v1841 = vshrl.u32 %v1840, 7
      %v1842 = vsub.s32 0, %v1841
      %v1843 = vrot.slane %v1838, %v1842
      %v1845 = vadd.f32 %v1822, %v1843
      %v1846 = vadd.f32 %v1823, %v1843
      %v1847 = vadd.f32 %v1824, %v1843
      %v1848 = vadd.f32 %v1825, %v1843
      %v1849 = vadd.f32 %v1826, %v1843
      %v1850 = vadd.f32 %v1827, %v1843
      %v1851 = vadd.f32 %v1828, %v1843
      %v1852 = vadd.f32 %v1829, %v1843
      %v1853 = vadd.f32 %v1830, %v1843
      %v1854 = vadd.f32 %v1831, %v1843
      %v1855 = vadd.f32 %v1832, %v1843
      %v1856 = vadd.f32 %v1833, %v1843
      %v1857 = vadd.f32 %v1834, %v1843
      %v1858 = vadd.f32 %v1835, %v1843
      %v1859 = vadd.f32 %v1836, %v1843
      %v1860 = vadd.f32 %v1837, %v1843
      %v1861 = vxor.u32 %v1845, 2147483648
      %v1862 = vxor.u32 %v1846, 2147483648
      %v1863 = vxor.u32 %v1847, 2147483648
      %v1864 = vxor.u32 %v1848, 2147483648
      %v1865 = vxor.u32 %v1849, 2147483648
      %v1866 = vxor.u32 %v1850, 2147483648
      %v1867 = vxor.u32 %v1851, 2147483648
      %v1868 = vxor.u32 %v1852, 2147483648
      %v1869 = vxor.u32 %v1853, 2147483648
      %v1870 = vxor.u32 %v1854, 2147483648
      %v1871 = vxor.u32 %v1855, 2147483648
      %v1872 = vxor.u32 %v1856, 2147483648
      %v1873 = vxor.u32 %v1857, 2147483648
      %v1874 = vxor.u32 %v1858, 2147483648
      %v1875 = vxor.u32 %v1859, 2147483648
      %v1876 = vxor.u32 %v1860, 2147483648
      %v1877 = vmul.f32 %v1861, 1.442695
      %v1878 = vpow.pop %v1877
      %v1879 = vmul.f32 %v1862, 1.442695
      %v1880 = vpow.pop %v1879
      %v1881 = vmul.f32 %v1863, 1.442695
      %v1882 = vpow.pop %v1881
      %v1883 = vmul.f32 %v1864, 1.442695
      %v1884 = vpow.pop %v1883
      %v1885 = vmul.f32 %v1865, 1.442695
      %v1886 = vpow.pop %v1885
      %v1887 = vmul.f32 %v1866, 1.442695
      %v1888 = vpow.pop %v1887
      %v1889 = vmul.f32 %v1867, 1.442695
      %v1890 = vpow.pop %v1889
      %v1891 = vmul.f32 %v1868, 1.442695
      %v1892 = vpow.pop %v1891
      %v1893 = vmul.f32 %v1869, 1.442695
      %v1894 = vpow.pop %v1893
      %v1895 = vmul.f32 %v1870, 1.442695
      %v1896 = vpow.pop %v1895
      %v1897 = vmul.f32 %v1871, 1.442695
      %v1898 = vpow.pop %v1897
      %v1899 = vmul.f32 %v1872, 1.442695
      %v1900 = vpow.pop %v1899
      %v1901 = vmul.f32 %v1873, 1.442695
      %v1902 = vpow.pop %v1901
      %v1903 = vmul.f32 %v1874, 1.442695
      %v1904 = vpow.pop %v1903
      %v1905 = vmul.f32 %v1875, 1.442695
      %v1906 = vpow.pop %v1905
      %v1907 = vmul.f32 %v1876, 1.442695
      %v1908 = vpow.pop %v1907
      %v1909 = vadd.f32 %v1878, 1.0
      %v1910 = vadd.f32 %v1880, 1.0
      %v1911 = vadd.f32 %v1882, 1.0
      %v1912 = vadd.f32 %v1884, 1.0
      %v1913 = vadd.f32 %v1886, 1.0
      %v1914 = vadd.f32 %v1888, 1.0
      %v1915 = vadd.f32 %v1890, 1.0
      %v1916 = vadd.f32 %v1892, 1.0
      %v1917 = vadd.f32 %v1894, 1.0
      %v1918 = vadd.f32 %v1896, 1.0
      %v1919 = vadd.f32 %v1898, 1.0
      %v1920 = vadd.f32 %v1900, 1.0
      %v1921 = vadd.f32 %v1902, 1.0
      %v1922 = vadd.f32 %v1904, 1.0
      %v1923 = vadd.f32 %v1906, 1.0
      %v1924 = vadd.f32 %v1908, 1.0
      %v1925 = vrcp.pop %v1909
      %v1926 = vmul.f32 1.0, %v1925
      %v1927 = vrcp.pop %v1910
      %v1928 = vmul.f32 1.0, %v1927
      %v1929 = vrcp.pop %v1911
      %v1930 = vmul.f32 1.0, %v1929
      %v1931 = vrcp.pop %v1912
      %v1932 = vmul.f32 1.0, %v1931
      %v1933 = vrcp.pop %v1913
      %v1934 = vmul.f32 1.0, %v1933
      %v1935 = vrcp.pop %v1914
      %v1936 = vmul.f32 1.0, %v1935
      %v1937 = vrcp.pop %v1915
      %v1938 = vmul.f32 1.0, %v1937
      %v1939 = vrcp.pop %v1916
      %v1940 = vmul.f32 1.0, %v1939
      %v1941 = vrcp.pop %v1917
      %v1942 = vmul.f32 1.0, %v1941
      %v1943 = vrcp.pop %v1918
      %v1944 = vmul.f32 1.0, %v1943
      %v1945 = vrcp.pop %v1919
      %v1946 = vmul.f32 1.0, %v1945
      %v1947 = vrcp.pop %v1920
      %v1948 = vmul.f32 1.0, %v1947
      %v1949 = vrcp.pop %v1921
      %v1950 = vmul.f32 1.0, %v1949
      %v1951 = vrcp.pop %v1922
      %v1952 = vmul.f32 1.0, %v1951
      %v1953 = vrcp.pop %v1923
      %v1954 = vmul.f32 1.0, %v1953
      %v1955 = vrcp.pop %v1924
      %v1956 = vmul.f32 1.0, %v1955
      %v1957 = vmul.f32 %v1845, %v1926
      %v1958 = vmul.f32 %v1846, %v1928
      %v1959 = vmul.f32 %v1847, %v1930
      %v1960 = vmul.f32 %v1848, %v1932
      %v1961 = vmul.f32 %v1849, %v1934
      %v1962 = vmul.f32 %v1850, %v1936
      %v1963 = vmul.f32 %v1851, %v1938
      %v1964 = vmul.f32 %v1852, %v1940
      %v1965 = vmul.f32 %v1853, %v1942
      %v1966 = vmul.f32 %v1854, %v1944
      %v1967 = vmul.f32 %v1855, %v1946
      %v1968 = vmul.f32 %v1856, %v1948
      %v1969 = vmul.f32 %v1857, %v1950
      %v1970 = vmul.f32 %v1858, %v1952
      %v1971 = vmul.f32 %v1859, %v1954
      %v1972 = vmul.f32 %v1860, %v1956
      %v1973 = vpack.c.bf16 %v1958, %v1957
      %v1974 = vpack.c.bf16 %v1960, %v1959
      %v1975 = vpack.c.bf16 %v1962, %v1961
      %v1976 = vpack.c.bf16 %v1964, %v1963
      %v1977 = vpack.c.bf16 %v1966, %v1965
      %v1978 = vpack.c.bf16 %v1968, %v1967
      %v1979 = vpack.c.bf16 %v1970, %v1969
      %v1980 = vpack.c.bf16 %v1972, %v1971
      %v1981 = vld [vmem:[%s3] sm:$0xf]
      %v1982 = vld [vmem:[%s3 + $0x4] sm:$0xf]
      %v1983 = vld [vmem:[%s3 + $0x8] sm:$0xf]
      %v1984 = vld [vmem:[%s3 + $0xc] sm:$0xf]
      %v1985 = vld [vmem:[%s3 + $0x10] sm:$0xf]
      %v1986 = vld [vmem:[%s3 + $0x14] sm:$0xf]
      %v1987 = vld [vmem:[%s3 + $0x18] sm:$0xf]
      %v1988 = vld [vmem:[%s3 + $0x1c] sm:$0xf]
      %v1989 = vld [vmem:[%s3 + $0x20] sm:$0xf]
      %v1990 = vld [vmem:[%s3 + $0x24] sm:$0xf]
      %v1991 = vld [vmem:[%s3 + $0x28] sm:$0xf]
      %v1992 = vld [vmem:[%s3 + $0x2c] sm:$0xf]
      %v1993 = vld [vmem:[%s3 + $0x30] sm:$0xf]
      %v1994 = vld [vmem:[%s3 + $0x34] sm:$0xf]
      %v1995 = vld [vmem:[%s3 + $0x38] sm:$0xf]
      %v1996 = vld [vmem:[%s3 + $0x3c] sm:$0xf]
      %v1997 = vld [vmem:[%s4] sm:$0x1]
      %v1999 = vlaneseq
      %v2000 = vshrl.u32 %v1999, 7
      %v2001 = vsub.s32 0, %v2000
      %v2002 = vrot.slane %v1997, %v2001
      %v2020 = vunpack.c.l.b16 %v1981
      %v2021 = vunpack.c.l.b16 %v1982
      %v2022 = vunpack.c.l.b16 %v1983
      %v2023 = vunpack.c.l.b16 %v1984
      %v2024 = vunpack.c.l.b16 %v1985
      %v2025 = vunpack.c.l.b16 %v1986
      %v2026 = vunpack.c.l.b16 %v1987
      %v2027 = vunpack.c.l.b16 %v1988
      %v2028 = vunpack.c.l.b16 %v1989
      %v2029 = vunpack.c.l.b16 %v1990
      %v2030 = vunpack.c.l.b16 %v1991
      %v2031 = vunpack.c.l.b16 %v1992
      %v2032 = vunpack.c.l.b16 %v1993
      %v2033 = vunpack.c.l.b16 %v1994
      %v2034 = vunpack.c.l.b16 %v1995
      %v2035 = vunpack.c.l.b16 %v1996
      %v2036 = vpack.c.b16 %v2021, %v2020
      %v2037 = vpack.c.b16 %v2023, %v2022
      %v2038 = vpack.c.b16 %v2025, %v2024
      %v2039 = vpack.c.b16 %v2027, %v2026
      %v2040 = vpack.c.b16 %v2029, %v2028
      %v2041 = vpack.c.b16 %v2031, %v2030
      %v2042 = vpack.c.b16 %v2033, %v2032
      %v2043 = vpack.c.b16 %v2035, %v2034
      %2052 = vmatprep.subr.bf16.mxu0 0
      %2053 = vmatpush1.bf16.msra.mxu0 %v2036
      %2054 = vmatprep.subr.bf16.mxu0 0
      %2055 = vmatpush1.bf16.msra.mxu0 %v2037
      %2056 = vmatprep.subr.bf16.mxu0 0
      %2057 = vmatpush1.bf16.msra.mxu0 %v2038
      %2058 = vmatprep.subr.bf16.mxu0 0
      %2059 = vmatpush1.bf16.msra.mxu0 %v2039
      %2060 = vmatprep.subr.bf16.mxu0 0
      %2061 = vmatpush1.bf16.msra.mxu0 %v2040
      %2062 = vmatprep.subr.bf16.mxu0 0
      %2063 = vmatpush1.bf16.msra.mxu0 %v2041
      %2064 = vmatprep.subr.bf16.mxu0 0
      %2065 = vmatpush1.bf16.msra.mxu0 %v2042
      %2066 = vmatprep.subr.bf16.mxu0 0
      %2067 = vmatpush1.bf16.msra.mxu0 %v2043
      %2068 = vmatprep.subr.bf16.mxu0 0
      %2069 = vmatpush1.bf16.msra.mxu0 0
      %2070 = vmatprep.subr.bf16.mxu0 0
      %2071 = vmatpush1.bf16.msra.mxu0 0
      %2072 = vmatprep.subr.bf16.mxu0 0
      %2073 = vmatpush1.bf16.msra.mxu0 0
      %2074 = vmatprep.subr.bf16.mxu0 0
      %2075 = vmatpush1.bf16.msra.mxu0 0
      %2076 = vmatprep.subr.bf16.mxu0 0
      %2077 = vmatpush1.bf16.msra.mxu0 0
      %2078 = vmatprep.subr.bf16.mxu0 0
      %2079 = vmatpush1.bf16.msra.mxu0 0
      %2080 = vmatprep.subr.bf16.mxu0 0
      %2081 = vmatpush1.bf16.msra.mxu0 0
      %2082 = vmatprep.subr.bf16.mxu0 0
      %2083 = vmatpush1.bf16.msra.mxu0 0
      %2084 = vmatprep.mubr.bf16.mxu0 0
      %2085 = vmatmul.mubr.bf16.gmra.mrb[0].mxu0 %v1973
      %v2086 = vpop.f32.mrb[0].mxu0
      %v2087 = vadd.f32 %v2002, %v2086
      %v2088 = vpop.f32.mrb[0].mxu0
      %v2089 = vpop.f32.mrb[0].mxu0
      %v2090 = vadd.f32 %v2002, %v2089
      %v2091 = vpop.f32.mrb[0].mxu0
      %2092 = vmatprep.mubr.bf16.mxu0 0
      %2093 = vmatmul.mubr.bf16.gmra.mrb[0].mxu0 %v1974
      %v2094 = vpop.f32.mrb[0].mxu0
      %v2095 = vadd.f32 %v2002, %v2094
      %v2096 = vpop.f32.mrb[0].mxu0
      %v2097 = vpop.f32.mrb[0].mxu0
      %v2098 = vadd.f32 %v2002, %v2097
      %v2099 = vpop.f32.mrb[0].mxu0
      %2100 = vmatprep.mubr.bf16.mxu0 0
      %2101 = vmatmul.mubr.bf16.gmra.mrb[0].mxu0 %v1975
      %v2102 = vpop.f32.mrb[0].mxu0
      %v2103 = vadd.f32 %v2002, %v2102
      %v2104 = vpop.f32.mrb[0].mxu0
      %v2105 = vpop.f32.mrb[0].mxu0
      %v2106 = vadd.f32 %v2002, %v2105
      %v2107 = vpop.f32.mrb[0].mxu0
      %2108 = vmatprep.mubr.bf16.mxu0 0
      %2109 = vmatmul.mubr.bf16.gmra.mrb[0].mxu0 %v1976
      %v2110 = vpop.f32.mrb[0].mxu0
      %v2111 = vadd.f32 %v2002, %v2110
      %v2112 = vpop.f32.mrb[0].mxu0
      %v2113 = vpop.f32.mrb[0].mxu0
      %v2114 = vadd.f32 %v2002, %v2113
      %v2115 = vpop.f32.mrb[0].mxu0
      %2116 = vmatprep.mubr.bf16.mxu0 0
      %2117 = vmatmul.mubr.bf16.gmra.mrb[0].mxu0 %v1977
      %v2118 = vpop.f32.mrb[0].mxu0
      %v2119 = vadd.f32 %v2002, %v2118
      %v2120 = vpop.f32.mrb[0].mxu0
      %v2121 = vpop.f32.mrb[0].mxu0
      %v2122 = vadd.f32 %v2002, %v2121
      %v2123 = vpop.f32.mrb[0].mxu0
      %2124 = vmatprep.mubr.bf16.mxu0 0
      %2125 = vmatmul.mubr.bf16.gmra.mrb[0].mxu0 %v1978
      %v2126 = vpop.f32.mrb[0].mxu0
      %v2127 = vadd.f32 %v2002, %v2126
      %v2128 = vpop.f32.mrb[0].mxu0
      %v2129 = vpop.f32.mrb[0].mxu0
      %v2130 = vadd.f32 %v2002, %v2129
      %v2131 = vpop.f32.mrb[0].mxu0
      %2132 = vmatprep.mubr.bf16.mxu0 0
      %2133 = vmatmul.mubr.bf16.gmra.mrb[0].mxu0 %v1979
      %v2134 = vpop.f32.mrb[0].mxu0
      %v2135 = vadd.f32 %v2002, %v2134
      %v2136 = vpop.f32.mrb[0].mxu0
      %v2137 = vpop.f32.mrb[0].mxu0
      %v2138 = vadd.f32 %v2002, %v2137
      %v2139 = vpop.f32.mrb[0].mxu0
      %2140 = vmatprep.mubr.bf16.mxu0 0
      %2141 = vmatmul.mubr.bf16.gmra.mrb[0].mxu0 %v1980
      %v2142 = vpop.f32.mrb[0].mxu0
      %v2143 = vadd.f32 %v2002, %v2142
      %v2144 = vpop.f32.mrb[0].mxu0
      %v2145 = vpop.f32.mrb[0].mxu0
      %v2146 = vadd.f32 %v2002, %v2145
      %v2147 = vpop.f32.mrb[0].mxu0
      %2148 = vdwg.mxu0
      %v2149 = vxor.u32 %v2087, 2147483648
      %v2150 = vxor.u32 %v2090, 2147483648
      %v2151 = vxor.u32 %v2095, 2147483648
      %v2152 = vxor.u32 %v2098, 2147483648
      %v2153 = vxor.u32 %v2103, 2147483648
      %v2154 = vxor.u32 %v2106, 2147483648
      %v2155 = vxor.u32 %v2111, 2147483648
      %v2156 = vxor.u32 %v2114, 2147483648
      %v2157 = vxor.u32 %v2119, 2147483648
      %v2158 = vxor.u32 %v2122, 2147483648
      %v2159 = vxor.u32 %v2127, 2147483648
      %v2160 = vxor.u32 %v2130, 2147483648
      %v2161 = vxor.u32 %v2135, 2147483648
      %v2162 = vxor.u32 %v2138, 2147483648
      %v2163 = vxor.u32 %v2143, 2147483648
      %v2164 = vxor.u32 %v2146, 2147483648
      %v2165 = vmul.f32 %v2149, 1.442695
      %v2166 = vpow.pop %v2165
      %v2167 = vmul.f32 %v2150, 1.442695
      %v2168 = vpow.pop %v2167
      %v2169 = vmul.f32 %v2151, 1.442695
      %v2170 = vpow.pop %v2169
      %v2171 = vmul.f32 %v2152, 1.442695
      %v2172 = vpow.pop %v2171
      %v2173 = vmul.f32 %v2153, 1.442695
      %v2174 = vpow.pop %v2173
      %v2175 = vmul.f32 %v2154, 1.442695
      %v2176 = vpow.pop %v2175
      %v2177 = vmul.f32 %v2155, 1.442695
      %v2178 = vpow.pop %v2177
      %v2179 = vmul.f32 %v2156, 1.442695
      %v2180 = vpow.pop %v2179
      %v2181 = vmul.f32 %v2157, 1.442695
      %v2182 = vpow.pop %v2181
      %v2183 = vmul.f32 %v2158, 1.442695
      %v2184 = vpow.pop %v2183
      %v2185 = vmul.f32 %v2159, 1.442695
      %v2186 = vpow.pop %v2185
      %v2187 = vmul.f32 %v2160, 1.442695
      %v2188 = vpow.pop %v2187
      %v2189 = vmul.f32 %v2161, 1.442695
      %v2190 = vpow.pop %v2189
      %v2191 = vmul.f32 %v2162, 1.442695
      %v2192 = vpow.pop %v2191
      %v2193 = vmul.f32 %v2163, 1.442695
      %v2194 = vpow.pop %v2193
      %v2195 = vmul.f32 %v2164, 1.442695
      %v2196 = vpow.pop %v2195
      %v2197 = vadd.f32 %v2166, 1.0
      %v2198 = vadd.f32 %v2168, 1.0
      %v2199 = vadd.f32 %v2170, 1.0
      %v2200 = vadd.f32 %v2172, 1.0
      %v2201 = vadd.f32 %v2174, 1.0
      %v2202 = vadd.f32 %v2176, 1.0
      %v2203 = vadd.f32 %v2178, 1.0
      %v2204 = vadd.f32 %v2180, 1.0
      %v2205 = vadd.f32 %v2182, 1.0
      %v2206 = vadd.f32 %v2184, 1.0
      %v2207 = vadd.f32 %v2186, 1.0
      %v2208 = vadd.f32 %v2188, 1.0
      %v2209 = vadd.f32 %v2190, 1.0
      %v2210 = vadd.f32 %v2192, 1.0
      %v2211 = vadd.f32 %v2194, 1.0
      %v2212 = vadd.f32 %v2196, 1.0
      %v2213 = vrcp.pop %v2197
      %v2214 = vmul.f32 1.0, %v2213
      %v2215 = vrcp.pop %v2198
      %v2216 = vmul.f32 1.0, %v2215
      %v2217 = vrcp.pop %v2199
      %v2218 = vmul.f32 1.0, %v2217
      %v2219 = vrcp.pop %v2200
      %v2220 = vmul.f32 1.0, %v2219
      %v2221 = vrcp.pop %v2201
      %v2222 = vmul.f32 1.0, %v2221
      %v2223 = vrcp.pop %v2202
      %v2224 = vmul.f32 1.0, %v2223
      %v2225 = vrcp.pop %v2203
      %v2226 = vmul.f32 1.0, %v2225
      %v2227 = vrcp.pop %v2204
      %v2228 = vmul.f32 1.0, %v2227
      %v2229 = vrcp.pop %v2205
      %v2230 = vmul.f32 1.0, %v2229
      %v2231 = vrcp.pop %v2206
      %v2232 = vmul.f32 1.0, %v2231
      %v2233 = vrcp.pop %v2207
      %v2234 = vmul.f32 1.0, %v2233
      %v2235 = vrcp.pop %v2208
      %v2236 = vmul.f32 1.0, %v2235
      %v2237 = vrcp.pop %v2209
      %v2238 = vmul.f32 1.0, %v2237
      %v2239 = vrcp.pop %v2210
      %v2240 = vmul.f32 1.0, %v2239
      %v2241 = vrcp.pop %v2211
      %v2242 = vmul.f32 1.0, %v2241
      %v2243 = vrcp.pop %v2212
      %v2244 = vmul.f32 1.0, %v2243
      %v2245 = vmul.f32 %v2087, %v2214
      %v2246 = vmul.f32 %v2090, %v2216
      %v2247 = vmul.f32 %v2095, %v2218
      %v2248 = vmul.f32 %v2098, %v2220
      %v2249 = vmul.f32 %v2103, %v2222
      %v2250 = vmul.f32 %v2106, %v2224
      %v2251 = vmul.f32 %v2111, %v2226
      %v2252 = vmul.f32 %v2114, %v2228
      %v2253 = vmul.f32 %v2119, %v2230
      %v2254 = vmul.f32 %v2122, %v2232
      %v2255 = vmul.f32 %v2127, %v2234
      %v2256 = vmul.f32 %v2130, %v2236
      %v2257 = vmul.f32 %v2135, %v2238
      %v2258 = vmul.f32 %v2138, %v2240
      %v2259 = vmul.f32 %v2143, %v2242
      %v2260 = vmul.f32 %v2146, %v2244
      %v2261 = vadd.f32 %v2245, %v2246
      %v2262 = vadd.f32 %v2261, %v2247
      %v2263 = vadd.f32 %v2262, %v2248
      %v2264 = vadd.f32 %v2263, %v2249
      %v2265 = vadd.f32 %v2264, %v2250
      %v2266 = vadd.f32 %v2265, %v2251
      %v2267 = vadd.f32 %v2266, %v2252
      %v2268 = vadd.f32 %v2267, %v2253
      %v2269 = vadd.f32 %v2268, %v2254
      %v2270 = vadd.f32 %v2269, %v2255
      %v2271 = vadd.f32 %v2270, %v2256
      %v2272 = vadd.f32 %v2271, %v2257
      %v2273 = vadd.f32 %v2272, %v2258
      %v2274 = vadd.f32 %v2273, %v2259
      %v2275 = vadd.f32 %v2274, %v2260
      %v2276 = vrot.slane %v2275, 4
      %v2277 = vadd.f32 %v2275, %v2276
      %v2278 = vrot.slane %v2277, 2
      %v2279 = vadd.f32 %v2277, %v2278
      %v2280 = vrot.slane %v2279, 1
      %v2281 = vadd.f32 %v2279, %v2280
      %2282 = vst [vmem:[%s242] sm:$0x1] %v2281
      %p2283 = scmp.lt.s32.totalorder %s20, 1
      %s2284 = scalar_select %p2283, %s20, 1
      %p2285 = scmp.lt.s32.totalorder %s21, 1
      %s2286 = scalar_select %p2285, %s21, 1
      %s2287 = smul.addr %s2284, 2
      %s2288 = sadd.s32 %s2286, %s2287
      %s2289 = scalar_lea.vmem %s5, %s2288
      // Predicated region
      $region41: #{custom_model_forward.2} parent=39 // pred_check
        %p2290 = pneg %p158
      $region42: #{custom_model_forward.2} parent=39 // pred_check_branch
        %2292 = sbr.rel (%p2290) target = $region44
      $region43: #{custom_model_forward.2} parent=39 // pred_region
        _
      $region44: #{custom_model_forward.2} parent=39 // pred_fallthru
        _
    $region40: #{custom_model_forward.2} parent=5 // pred_fallthru
      _
    %p2293 = scmp.le.s32.totalorder 2, %s11
    // Predicated region
    $region45: #{custom_model_forward.2} parent=5 // pred_check
      %p2294 = pneg %p2293
    $region46: #{custom_model_forward.2} parent=5 // pred_check_branch
      %2296 = sbr.rel (%p2294) target = $region48
    $region47: #{custom_model_forward.2} parent=5 // pred_region
      %s2297 = ssub.s32 %s11, 2
      // Predicated region
      $region49: #{custom_model_forward.2} parent=47 // pred_check
        %p2298 = pneg %p164
      $region50: #{custom_model_forward.2} parent=47 // pred_check_branch
        %2300 = sbr.rel (%p2298) target = $region52
      $region51: #{custom_model_forward.2} parent=47 // pred_region
        %p2301 = scmp.lt.s32.totalorder %s22, 1
        %s2302 = scalar_select %p2301, %s22, 1
        %p2303 = scmp.lt.s32.totalorder %s23, 1
        %s2304 = scalar_select %p2303, %s23, 1
        %s2305 = smul.addr %s2302, 2
        %s2306 = sadd.s32 %s2304, %s2305
        %s2307 = scalar_lea.vmem %s5, %s2306
      $region52: #{custom_model_forward.2} parent=47 // pred_fallthru
        _
    $region48: #{custom_model_forward.2} parent=5 // pred_fallthru
      _
  $region6: #{custom_model_forward.2} parent=0 // loop_footer
    %s15 = sadd.s32 1, %s11
  $region7: #{custom_model_forward.2} parent=0 // loop_footer_branch
    %10 = sbr.rel target = $region3
  $region8: #{custom_model_forward.2} parent=0 // loop_exit
    _

</llo_original>
